<compile_context>
chip_gen: v5e
topology: v5e:2x2
jax: 0.10.0
libtpu: 0.0.40
codegen_flags: <defaults>
</compile_context>

<pallas_src>
import jax
import jax.numpy as jnp
from jax.experimental import pallas as pl
from jax.experimental.pallas import tpu as pltpu

BN_EPS = 1e-5
_R0, _C0 = 8, 128   # (sublane, lane)-aligned origin of the conv pad-scratch interior


def _sim_stats_kernel(a_ref, b_ref, stats_ref):
    # a_ref: (Bt, F, Na) f32   b_ref: (Bt, F, Nb) f32
    # stats_ref: (Bt, 1, 2) f32 out -- per-batch [mean, sum((x - mean)^2)]
    Bt = a_ref.shape[0]
    Na = a_ref.shape[2]
    Nb = b_ref.shape[2]
    inv_n = 1.0 / float(Na * Nb)
    for i in range(Bt):
        # bf16 cast in-kernel (hides under the MXU); f32 accumulation.
        a = a_ref[i].astype(jnp.bfloat16)                   # (F, Na)
        b = b_ref[i].astype(jnp.bfloat16)                   # (F, Nb)
        sim = jax.lax.dot_general(                           # (Na, Nb) f32
            a, b, dimension_numbers=(((0,), (0,)), ((), ())),
            preferred_element_type=jnp.float32)
        rowsum = jnp.sum(sim, axis=1, keepdims=True)                  # (Na, 1)
        mean11 = jnp.sum(rowsum, axis=0, keepdims=True) * inv_n       # (1, 1)
        d = sim - mean11
        drow = jnp.sum(d * d, axis=1, keepdims=True)                  # (Na, 1)
        ssd11 = jnp.sum(drow, axis=0, keepdims=True)                  # (1, 1)
        stats_ref[i, :, 0:1] = mean11
        stats_ref[i, :, 1:2] = ssd11


def _bn_conv_sigmoid_kernel(bn_ref, w_ref, bias_ref, stats_ref, a_ref, b_ref,
                            out_ref, pad_ref):
    # bn_ref:    (2,)   SMEM  [gamma, beta]
    # w_ref:     (K*9,) SMEM  flattened OIHW conv weights (in-channels = 1)
    # bias_ref:  (K,)   SMEM
    # stats_ref: (B, 1, 2) VMEM  per-batch [mean, ssd] from pass 1 (full array)
    # a_ref:     (Bt, F, Na) f32 VMEM      b_ref: (Bt, F, Nb) f32 VMEM
    # out_ref:   (Bt, K, Na, Nb) f32 VMEM
    # pad_ref:   (Na+16, Nb+256) f32 VMEM scratch; interior at [_R0:, _C0:]
    Bt, _, Na = a_ref.shape
    Nb = b_ref.shape[2]
    K = out_ref.shape[1]
    Bglob = stats_ref.shape[0]

    # ---- fold global training-mode BatchNorm into (scale, shift) in-kernel ----
    # Pooled combine of per-batch mean-centered stats (numerically stable).
    st = stats_ref[:, 0, :]                                            # (B, 2)
    means = st[:, 0:1]                                                 # (B, 1)
    ssds = st[:, 1:2]                                                  # (B, 1)
    mean11 = jnp.sum(means, axis=0, keepdims=True) * (1.0 / Bglob)     # (1, 1)
    dev = means - mean11
    ssd11 = jnp.sum(ssds + float(Na * Nb) * dev * dev, axis=0, keepdims=True)
    var11 = ssd11 * (1.0 / float(Bglob * Na * Nb))                     # biased var
    scale11 = jax.lax.rsqrt(var11 + BN_EPS) * bn_ref[0]                # (1, 1)
    shift11 = bn_ref[1] - mean11 * scale11                             # (1, 1)

    # ---- zero only the 1-element halo (interior is overwritten every batch) ----
    zrow = jnp.zeros((1, Nb + 2), jnp.float32)
    zcol = jnp.zeros((Na + 2, 1), jnp.float32)
    pad_ref[_R0 - 1:_R0, _C0 - 1:_C0 + Nb + 1] = zrow                  # top
    pad_ref[_R0 + Na:_R0 + Na + 1, _C0 - 1:_C0 + Nb + 1] = zrow        # bottom
    pad_ref[_R0 - 1:_R0 + Na + 1, _C0 - 1:_C0] = zcol                  # left
    pad_ref[_R0 - 1:_R0 + Na + 1, _C0 + Nb:_C0 + Nb + 1] = zcol        # right

    for i in range(Bt):
        # Recompute the similarity map on the otherwise-idle MXU instead of
        # round-tripping an f32 (Na, Nb) intermediate through HBM.
        a = a_ref[i].astype(jnp.bfloat16)
        b = b_ref[i].astype(jnp.bfloat16)
        sim = jax.lax.dot_general(
            a, b, dimension_numbers=(((0,), (0,)), ((), ())),
            preferred_element_type=jnp.float32)                        # (Na, Nb)

        # Aligned, unmasked interior store; the 9 conv taps are static slices of
        # the padded scratch (the zero halo implements padding=1).
        pad_ref[_R0:_R0 + Na, _C0:_C0 + Nb] = sim * scale11 + shift11

        if K <= 8:
            # tap-outer / channel-inner: each tap sliced once, K live accumulators.
            accs = [None] * K
            for idx in range(9):
                p, q = idx // 3, idx % 3
                tap = pad_ref[_R0 - 1 + p:_R0 - 1 + p + Na,
                              _C0 - 1 + q:_C0 - 1 + q + Nb]
                for k in range(K):
                    term = tap * w_ref[k * 9 + idx]
                    accs[k] = term if idx == 0 else accs[k] + term
            for k in range(K):
                out_ref[i, k] = jax.nn.sigmoid(accs[k] + bias_ref[k])
        else:
            # channel-outer: one live accumulator, taps re-read per channel
            # (loads are cheap; avoids K simultaneous (Na, Nb) f32 accumulators).
            for k in range(K):
                acc = None
                for idx in range(9):
                    p, q = idx // 3, idx % 3
                    tap = pad_ref[_R0 - 1 + p:_R0 - 1 + p + Na,
                                  _C0 - 1 + q:_C0 - 1 + q + Nb]
                    term = tap * w_ref[k * 9 + idx]
                    acc = term if idx == 0 else acc + term
                out_ref[i, k] = jax.nn.sigmoid(acc + bias_ref[k])


def _vmem_capacity_bytes():
    try:
        return int(pltpu.get_tpu_info().vmem_capacity_bytes)
    except Exception:
        return 64 * 1024 * 1024          # conservative: v7x per-TensorCore VMEM


def _pass2_step_bytes(bt, B, F, Na, Nb, K):
    f32 = 4
    blk = (bt * F * Na + bt * F * Nb + B * 2 + bt * K * Na * Nb) * f32
    pad = (Na + 16) * (Nb + 256) * f32
    return 2 * blk + pad                 # in/out blocks are double-buffered


def _pick_batch_tile(B, F, Na, Nb, K, budget):
    best = 1
    for bt in range(1, B + 1):
        if B % bt:
            continue
        if B >= 2 and B // bt < 2:
            continue                     # keep >= 2 grid steps (v7x megacore)
        if _pass2_step_bytes(bt, B, F, Na, Nb, K) <= budget:
            best = bt
    return best


@jax.jit
def connect_net_v2_forward(vectors_a, vectors_b, conv_w, conv_b, bn_gamma, bn_beta):
    """vectors_a: (B, F, Na, 1), vectors_b: (B, F, Nb, 1) -- same as the torch call."""
    B, F, Na, _ = vectors_a.shape
    Nb = vectors_b.shape[2]
    K = conv_w.shape[0]

    # Trailing dim is 1 -> reshape is a free bitcast; keep f32 here (the bf16
    # cast happens inside the kernels, so A/B are read from HBM exactly once
    # per pass with no wrapper materialization).
    a_fm = jnp.reshape(vectors_a, (B, F, Na)).astype(jnp.float32)
    b_fm = jnp.reshape(vectors_b, (B, F, Nb)).astype(jnp.float32)

    # Generation-aware VMEM budget (v7x: 64 MiB/core, v5e/v6e: 128 MiB).
    vmem_cap = _vmem_capacity_bytes()
    vmem_limit = (vmem_cap * 3) // 4
    Bt = _pick_batch_tile(B, F, Na, Nb, K, budget=vmem_limit // 2)
    grid = (B // Bt,)

    cparams = pltpu.CompilerParams(
        dimension_semantics=("parallel",),
        vmem_limit_bytes=int(vmem_limit),
    )

    # ---- Pass 1: per-batch BatchNorm statistics only (no sim written to HBM) ----
    stats = pl.pallas_call(
        _sim_stats_kernel,
        grid=grid,
        in_specs=[
            pl.BlockSpec((Bt, F, Na), lambda g: (g, 0, 0)),
            pl.BlockSpec((Bt, F, Nb), lambda g: (g, 0, 0)),
        ],
        out_specs=pl.BlockSpec((Bt, 1, 2), lambda g: (g, 0, 0)),
        out_shape=jax.ShapeDtypeStruct((B, 1, 2), jnp.float32),
        compiler_params=cparams,
    )(a_fm, b_fm)

    bn_affine = jnp.stack([jnp.asarray(bn_gamma, jnp.float32),
                           jnp.asarray(bn_beta, jnp.float32)])        # (2,)
    w_flat = conv_w.reshape(K * 9).astype(jnp.float32)                # (K*9,)
    bias = conv_b.astype(jnp.float32)                                 # (K,)

    # ---- Pass 2: recompute matmul + in-kernel BN fold + 3x3 conv + sigmoid ----
    # Output kept f32 to match the torch module; emit bf16 here to halve the
    # writeback if the caller's tolerance allows.
    out = pl.pallas_call(
        _bn_conv_sigmoid_kernel,
        grid=grid,
        in_specs=[
            pl.BlockSpec(memory_space=pltpu.MemorySpace.SMEM),        # [gamma, beta]
            pl.BlockSpec(memory_space=pltpu.MemorySpace.SMEM),        # conv weights
            pl.BlockSpec(memory_space=pltpu.MemorySpace.SMEM),        # conv bias
            pl.BlockSpec((B, 1, 2), lambda g: (0, 0, 0)),             # per-batch stats
            pl.BlockSpec((Bt, F, Na), lambda g: (g, 0, 0)),
            pl.BlockSpec((Bt, F, Nb), lambda g: (g, 0, 0)),
        ],
        out_specs=pl.BlockSpec((Bt, K, Na, Nb), lambda g: (g, 0, 0, 0)),
        out_shape=jax.ShapeDtypeStruct((B, K, Na, Nb), jnp.float32),
        scratch_shapes=[pltpu.VMEM((Na + 16, Nb + 256), jnp.float32)],
        compiler_params=cparams,
    )(bn_affine, w_flat, bias, stats, a_fm, b_fm)
    return out


def _reference_forward(vectors_a, vectors_b, conv_w, conv_b, bn_gamma, bn_beta):
    """Pure-JAX reference mirroring the PyTorch forward exactly."""
    a = jnp.transpose(vectors_a, (0, 3, 2, 1))   # (B, 1, Na, F)
    b = jnp.transpose(vectors_b, (0, 3, 1, 2))   # (B, 1, F, Nb)
    m = jnp.matmul(a, b)                         # (B, 1, Na, Nb)
    mean = jnp.mean(m)
    var = jnp.mean((m - mean) ** 2)
    normed = (m - mean) * jax.lax.rsqrt(var + BN_EPS) * bn_gamma + bn_beta
    y = jax.lax.conv_general_dilated(
        normed, conv_w, window_strides=(1, 1), padding=((1, 1), (1, 1)),
        dimension_numbers=("NCHW", "OIHW", "NCHW"))
    y = y + conv_b[None, :, None, None]
    return jax.nn.sigmoid(y)


if __name__ == "__main__":
    # Nb chosen as a multiple of 128 so per-channel output slabs and the pad
    # scratch interior are lane-dense (unmasked vst); shapes stay small.
    B, F, Na, Nb, K = 2, 32, 16, 128, 4  # batch, features_size, items_a, items_b, classes

    key = jax.random.PRNGKey(0)
    k1, k2, k3, k4 = jax.random.split(key, 4)
    vectors_a = jax.random.normal(k1, (B, F, Na, 1), jnp.float32)
    vectors_b = jax.random.normal(k2, (B, F, Nb, 1), jnp.float32)

    # Deterministic Conv2d(1, K, 3) parameter init (PyTorch-style uniform bounds).
    fan_in = 1 * 3 * 3
    bound = 1.0 / (fan_in ** 0.5)
    conv_w = jax.random.uniform(k3, (K, 1, 3, 3), jnp.float32, -bound, bound)
    conv_b = jax.random.uniform(k4, (K,), jnp.float32, -bound, bound)
    bn_gamma, bn_beta = 1.0, 0.0  # BatchNorm2d(1) default affine params

    out = connect_net_v2_forward(vectors_a, vectors_b, conv_w, conv_b, bn_gamma, bn_beta)
    out = jax.block_until_ready(out)

    ref = _reference_forward(vectors_a, vectors_b, conv_w, conv_b, bn_gamma, bn_beta)
    assert out.shape == (B, K, Na, Nb), out.shape
    max_err = float(jnp.max(jnp.abs(out - ref)))
    # Tolerance covers the bf16 MXU operands (f32 accumulation everywhere else).
    assert jnp.allclose(out, ref, atol=1e-2, rtol=1e-2), max_err

    print("KERNEL_OK")
</pallas_src>

<mosaic_0001>
module attributes {stable_mosaic.version = 11 : i64} {
  func.func @_sim_stats_kernel(%arg0: i32, %arg1: memref<1x32x16xf32, #tpu.memory_space<vmem>>, %arg2: memref<1x32x128xf32, #tpu.memory_space<vmem>>, %arg3: memref<1x1x2xf32, #tpu.memory_space<vmem>>) attributes {dimension_semantics = [#tpu.dimension_semantics<parallel>], iteration_bounds = array<i64: 2>, scalar_prefetch = 0 : i64, scratch_operands = 0 : i64, tpu.core_type = #tpu.core_type<tc>, window_params = [{transform_indices = @transform_0, window_bounds = array<i64: 1, 32, 16>}, {transform_indices = @transform_1, window_bounds = array<i64: 1, 32, 128>}, {transform_indices = @transform_2, window_bounds = array<i64: 1, 1, 2>}]} {
    %c0 = arith.constant 0 : index
    %c0_0 = arith.constant 0 : index
    %c0_1 = arith.constant 0 : index
    %0 = vector.load %arg1[%c0, %c0_0, %c0_1] : memref<1x32x16xf32, #tpu.memory_space<vmem>>, vector<1x32x16xf32>
    %1 = vector.shape_cast %0 : vector<1x32x16xf32> to vector<32x16xf32>
    %2 = arith.truncf %1 : vector<32x16xf32> to vector<32x16xbf16>
    %c0_2 = arith.constant 0 : index
    %c0_3 = arith.constant 0 : index
    %c0_4 = arith.constant 0 : index
    %3 = vector.load %arg2[%c0_2, %c0_3, %c0_4] : memref<1x32x128xf32, #tpu.memory_space<vmem>>, vector<1x32x128xf32>
    %4 = vector.shape_cast %3 : vector<1x32x128xf32> to vector<32x128xf32>
    %5 = arith.truncf %4 : vector<32x128xf32> to vector<32x128xbf16>
    %cst = arith.constant dense<0.000000e+00> : vector<16x128xf32>
    %6 = tpu.matmul %2, %5, %cst {dimension_numbers = #tpu.dot_dimension_numbers<[0], [0], [1], [1], [0, 1, 1, 1], [], []>} : vector<32x16xbf16>, vector<32x128xbf16>, vector<16x128xf32> -> vector<16x128xf32>
    %cst_5 = arith.constant dense<0.000000e+00> : vector<16xf32>
    %7 = vector.multi_reduction <add>, %6, %cst_5 [1] : vector<16x128xf32> to vector<16xf32>
    %8 = vector.shape_cast %7 : vector<16xf32> to vector<16x1xf32>
    %cst_6 = arith.constant dense<0.000000e+00> : vector<1xf32>
    %9 = vector.multi_reduction <add>, %8, %cst_6 [0] : vector<16x1xf32> to vector<1xf32>
    %10 = vector.shape_cast %9 : vector<1xf32> to vector<1x1xf32>
    %cst_7 = arith.constant 4.8828125E-4 : f32
    %11 = vector.broadcast %cst_7 : f32 to vector<1x1xf32>
    %12 = arith.mulf %10, %11 : vector<1x1xf32>
    %13 = vector.broadcast %12 : vector<1x1xf32> to vector<16x128xf32>
    %14 = arith.subf %6, %13 : vector<16x128xf32>
    %15 = arith.mulf %14, %14 : vector<16x128xf32>
    %cst_8 = arith.constant dense<0.000000e+00> : vector<16xf32>
    %16 = vector.multi_reduction <add>, %15, %cst_8 [1] : vector<16x128xf32> to vector<16xf32>
    %17 = vector.shape_cast %16 : vector<16xf32> to vector<16x1xf32>
    %cst_9 = arith.constant dense<0.000000e+00> : vector<1xf32>
    %18 = vector.multi_reduction <add>, %17, %cst_9 [0] : vector<16x1xf32> to vector<1xf32>
    %19 = vector.shape_cast %18 : vector<1xf32> to vector<1x1xf32>
    %c0_10 = arith.constant 0 : index
    %c0_11 = arith.constant 0 : index
    %c0_12 = arith.constant 0 : index
    %20 = vector.load %arg3[%c0_10, %c0_11, %c0_12] : memref<1x1x2xf32, #tpu.memory_space<vmem>>, vector<1x1x1xf32>
    %21 = vector.shape_cast %20 : vector<1x1x1xf32> to vector<1x1xf32>
    %22 = vector.shape_cast %12 : vector<1x1xf32> to vector<1x1x1xf32>
    tpu.vector_store %arg3[%c0_10, %c0_11, %c0_12], %22 {strides = array<i32>} : memref<1x1x2xf32, #tpu.memory_space<vmem>>, vector<1x1x1xf32>,
    %c0_13 = arith.constant 0 : index
    %c0_14 = arith.constant 0 : index
    %c1 = arith.constant 1 : index
    %23 = vector.load %arg3[%c0_13, %c0_14, %c1] : memref<1x1x2xf32, #tpu.memory_space<vmem>>, vector<1x1x1xf32>
    %24 = vector.shape_cast %23 : vector<1x1x1xf32> to vector<1x1xf32>
    %25 = vector.shape_cast %19 : vector<1x1xf32> to vector<1x1x1xf32>
    tpu.vector_store %arg3[%c0_13, %c0_14, %c1], %25 {strides = array<i32>} : memref<1x1x2xf32, #tpu.memory_space<vmem>>, vector<1x1x1xf32>,
    return
  }
  func.func @transform_0(%arg0: i32) -> (i32, i32, i32) {
    %c0_i32 = arith.constant 0 : i32
    %c0_i32_0 = arith.constant 0 : i32
    %c0_i32_1 = arith.constant 0 : i32
    return %arg0, %c0_i32, %c0_i32_0 : i32, i32, i32
  }
  func.func @transform_1(%arg0: i32) -> (i32, i32, i32) {
    %c0_i32 = arith.constant 0 : i32
    %c0_i32_0 = arith.constant 0 : i32
    %c0_i32_1 = arith.constant 0 : i32
    return %arg0, %c0_i32, %c0_i32_0 : i32, i32, i32
  }
  func.func @transform_2(%arg0: i32) -> (i32, i32, i32) {
    %c0_i32 = arith.constant 0 : i32
    %c0_i32_0 = arith.constant 0 : i32
    %c0_i32_1 = arith.constant 0 : i32
    return %arg0, %c0_i32, %c0_i32_0 : i32, i32, i32
  }
}

module attributes {stable_mosaic.version = 11 : i64} {
  func.func @_bn_conv_sigmoid_kernel(%arg0: i32, %arg1: memref<2xf32, #tpu.memory_space<smem>>, %arg2: memref<36xf32, #tpu.memory_space<smem>>, %arg3: memref<4xf32, #tpu.memory_space<smem>>, %arg4: memref<2x1x2xf32, #tpu.memory_space<vmem>>, %arg5: memref<1x32x16xf32, #tpu.memory_space<vmem>>, %arg6: memref<1x32x128xf32, #tpu.memory_space<vmem>>, %arg7: memref<1x4x16x128xf32, #tpu.memory_space<vmem>>, %arg8: memref<32x384xf32, #tpu.memory_space<vmem>>) attributes {dimension_semantics = [#tpu.dimension_semantics<parallel>], iteration_bounds = array<i64: 2>, scalar_prefetch = 0 : i64, scratch_operands = 1 : i64, tpu.core_type = #tpu.core_type<tc>, window_params = [{transform_indices = @transform_0, window_bounds = array<i64: 2>}, {transform_indices = @transform_1, window_bounds = array<i64: 36>}, {transform_indices = @transform_2, window_bounds = array<i64: 4>}, {pipeline_mode = #tpu.pipeline_mode<synchronous>, transform_indices = @transform_3, window_bounds = array<i64: 2, 1, 2>}, {transform_indices = @transform_4, window_bounds = array<i64: 1, 32, 16>}, {transform_indices = @transform_5, window_bounds = array<i64: 1, 32, 128>}, {transform_indices = @transform_6, window_bounds = array<i64: 1, 4, 16, 128>}]} {
    %c0 = arith.constant 0 : index
    %c0_0 = arith.constant 0 : index
    %c0_1 = arith.constant 0 : index
    %0 = vector.load %arg4[%c0, %c0_0, %c0_1] : memref<2x1x2xf32, #tpu.memory_space<vmem>>, vector<2x1x2xf32>
    %1 = vector.shape_cast %0 : vector<2x1x2xf32> to vector<2x2xf32>
    %2 = vector.extract_strided_slice %1 {offsets = [0, 0], sizes = [2, 1], strides = [1, 1]} : vector<2x2xf32> to vector<2x1xf32>
    %3 = vector.extract_strided_slice %1 {offsets = [0, 1], sizes = [2, 1], strides = [1, 1]} : vector<2x2xf32> to vector<2x1xf32>
    %cst = arith.constant dense<0.000000e+00> : vector<1xf32>
    %4 = vector.multi_reduction <add>, %2, %cst [0] : vector<2x1xf32> to vector<1xf32>
    %5 = vector.shape_cast %4 : vector<1xf32> to vector<1x1xf32>
    %cst_2 = arith.constant 5.000000e-01 : f32
    %6 = vector.broadcast %cst_2 : f32 to vector<1x1xf32>
    %7 = arith.mulf %5, %6 : vector<1x1xf32>
    %8 = vector.broadcast %7 : vector<1x1xf32> to vector<2x1xf32>
    %9 = arith.subf %2, %8 : vector<2x1xf32>
    %cst_3 = arith.constant 2.048000e+03 : f32
    %10 = vector.broadcast %cst_3 : f32 to vector<2x1xf32>
    %11 = arith.mulf %10, %9 : vector<2x1xf32>
    %12 = arith.mulf %11, %9 : vector<2x1xf32>
    %13 = arith.addf %3, %12 : vector<2x1xf32>
    %cst_4 = arith.constant dense<0.000000e+00> : vector<1xf32>
    %14 = vector.multi_reduction <add>, %13, %cst_4 [0] : vector<2x1xf32> to vector<1xf32>
    %15 = vector.shape_cast %14 : vector<1xf32> to vector<1x1xf32>
    %cst_5 = arith.constant 2.44140625E-4 : f32
    %16 = vector.broadcast %cst_5 : f32 to vector<1x1xf32>
    %17 = arith.mulf %15, %16 : vector<1x1xf32>
    %cst_6 = arith.constant 9.99999974E-6 : f32
    %18 = vector.broadcast %cst_6 : f32 to vector<1x1xf32>
    %19 = arith.addf %17, %18 : vector<1x1xf32>
    %20 = math.rsqrt %19 : vector<1x1xf32>
    %c0_7 = arith.constant 0 : index
    %21 = memref.load %arg1[%c0_7] : memref<2xf32, #tpu.memory_space<smem>>
    %22 = vector.broadcast %21 : f32 to vector<1x1xf32>
    %23 = arith.mulf %20, %22 : vector<1x1xf32>
    %c1 = arith.constant 1 : index
    %24 = memref.load %arg1[%c1] : memref<2xf32, #tpu.memory_space<smem>>
    %25 = arith.mulf %7, %23 : vector<1x1xf32>
    %26 = vector.broadcast %24 : f32 to vector<1x1xf32>
    %27 = arith.subf %26, %25 : vector<1x1xf32>
    %cst_8 = arith.constant 0.000000e+00 : f32
    %28 = vector.broadcast %cst_8 : f32 to vector<1x130xf32>
    %cst_9 = arith.constant 0.000000e+00 : f32
    %29 = vector.broadcast %cst_9 : f32 to vector<18x1xf32>
    %c7 = arith.constant 7 : index
    %c127 = arith.constant 127 : index
    %30 = vector.load %arg8[%c7, %c127] : memref<32x384xf32, #tpu.memory_space<vmem>>, vector<1x130xf32>
    tpu.vector_store %arg8[%c7, %c127], %28 {strides = array<i32>} : memref<32x384xf32, #tpu.memory_space<vmem>>, vector<1x130xf32>,
    %c24 = arith.constant 24 : index
    %c127_10 = arith.constant 127 : index
    %31 = vector.load %arg8[%c24, %c127_10] : memref<32x384xf32, #tpu.memory_space<vmem>>, vector<1x130xf32>
    tpu.vector_store %arg8[%c24, %c127_10], %28 {strides = array<i32>} : memref<32x384xf32, #tpu.memory_space<vmem>>, vector<1x130xf32>,
    %c7_11 = arith.constant 7 : index
    %c127_12 = arith.constant 127 : index
    %32 = vector.load %arg8[%c7_11, %c127_12] : memref<32x384xf32, #tpu.memory_space<vmem>>, vector<18x1xf32>
    tpu.vector_store %arg8[%c7_11, %c127_12], %29 {strides = array<i32>} : memref<32x384xf32, #tpu.memory_space<vmem>>, vector<18x1xf32>,
    %c7_13 = arith.constant 7 : index
    %c256 = arith.constant 256 : index
    %33 = vector.load %arg8[%c7_13, %c256] : memref<32x384xf32, #tpu.memory_space<vmem>>, vector<18x1xf32>
    tpu.vector_store %arg8[%c7_13, %c256], %29 {strides = array<i32>} : memref<32x384xf32, #tpu.memory_space<vmem>>, vector<18x1xf32>,
    %c0_14 = arith.constant 0 : index
    %c0_15 = arith.constant 0 : index
    %c0_16 = arith.constant 0 : index
    %34 = vector.load %arg5[%c0_14, %c0_15, %c0_16] : memref<1x32x16xf32, #tpu.memory_space<vmem>>, vector<1x32x16xf32>
    %35 = vector.shape_cast %34 : vector<1x32x16xf32> to vector<32x16xf32>
    %36 = arith.truncf %35 : vector<32x16xf32> to vector<32x16xbf16>
    %c0_17 = arith.constant 0 : index
    %c0_18 = arith.constant 0 : index
    %c0_19 = arith.constant 0 : index
    %37 = vector.load %arg6[%c0_17, %c0_18, %c0_19] : memref<1x32x128xf32, #tpu.memory_space<vmem>>, vector<1x32x128xf32>
    %38 = vector.shape_cast %37 : vector<1x32x128xf32> to vector<32x128xf32>
    %39 = arith.truncf %38 : vector<32x128xf32> to vector<32x128xbf16>
    %cst_20 = arith.constant dense<0.000000e+00> : vector<16x128xf32>
    %40 = tpu.matmul %36, %39, %cst_20 {dimension_numbers = #tpu.dot_dimension_numbers<[0], [0], [1], [1], [0, 1, 1, 1], [], []>} : vector<32x16xbf16>, vector<32x128xbf16>, vector<16x128xf32> -> vector<16x128xf32>
    %41 = vector.broadcast %23 : vector<1x1xf32> to vector<16x128xf32>
    %42 = arith.mulf %40, %41 : vector<16x128xf32>
    %43 = vector.broadcast %27 : vector<1x1xf32> to vector<16x128xf32>
    %44 = arith.addf %42, %43 : vector<16x128xf32>
    %c8 = arith.constant 8 : index
    %c128 = arith.constant 128 : index
    %45 = vector.load %arg8[%c8, %c128] : memref<32x384xf32, #tpu.memory_space<vmem>>, vector<16x128xf32>
    tpu.vector_store %arg8[%c8, %c128], %44 {strides = array<i32>} : memref<32x384xf32, #tpu.memory_space<vmem>>, vector<16x128xf32>,
    %c7_21 = arith.constant 7 : index
    %c127_22 = arith.constant 127 : index
    %46 = vector.load %arg8[%c7_21, %c127_22] : memref<32x384xf32, #tpu.memory_space<vmem>>, vector<16x128xf32>
    %c0_23 = arith.constant 0 : index
    %47 = memref.load %arg2[%c0_23] : memref<36xf32, #tpu.memory_space<smem>>
    %48 = vector.broadcast %47 : f32 to vector<16x128xf32>
    %49 = arith.mulf %46, %48 : vector<16x128xf32>
    %c9 = arith.constant 9 : index
    %50 = memref.load %arg2[%c9] : memref<36xf32, #tpu.memory_space<smem>>
    %51 = vector.broadcast %50 : f32 to vector<16x128xf32>
    %52 = arith.mulf %46, %51 : vector<16x128xf32>
    %c18 = arith.constant 18 : index
    %53 = memref.load %arg2[%c18] : memref<36xf32, #tpu.memory_space<smem>>
    %54 = vector.broadcast %53 : f32 to vector<16x128xf32>
    %55 = arith.mulf %46, %54 : vector<16x128xf32>
    %c27 = arith.constant 27 : index
    %56 = memref.load %arg2[%c27] : memref<36xf32, #tpu.memory_space<smem>>
    %57 = vector.broadcast %56 : f32 to vector<16x128xf32>
    %58 = arith.mulf %46, %57 : vector<16x128xf32>
    %c7_24 = arith.constant 7 : index
    %c128_25 = arith.constant 128 : index
    %59 = vector.load %arg8[%c7_24, %c128_25] : memref<32x384xf32, #tpu.memory_space<vmem>>, vector<16x128xf32>
    %c1_26 = arith.constant 1 : index
    %60 = memref.load %arg2[%c1_26] : memref<36xf32, #tpu.memory_space<smem>>
    %61 = vector.broadcast %60 : f32 to vector<16x128xf32>
    %62 = arith.mulf %59, %61 : vector<16x128xf32>
    %63 = arith.addf %49, %62 : vector<16x128xf32>
    %c10 = arith.constant 10 : index
    %64 = memref.load %arg2[%c10] : memref<36xf32, #tpu.memory_space<smem>>
    %65 = vector.broadcast %64 : f32 to vector<16x128xf32>
    %66 = arith.mulf %59, %65 : vector<16x128xf32>
    %67 = arith.addf %52, %66 : vector<16x128xf32>
    %c19 = arith.constant 19 : index
    %68 = memref.load %arg2[%c19] : memref<36xf32, #tpu.memory_space<smem>>
    %69 = vector.broadcast %68 : f32 to vector<16x128xf32>
    %70 = arith.mulf %59, %69 : vector<16x128xf32>
    %71 = arith.addf %55, %70 : vector<16x128xf32>
    %c28 = arith.constant 28 : index
    %72 = memref.load %arg2[%c28] : memref<36xf32, #tpu.memory_space<smem>>
    %73 = vector.broadcast %72 : f32 to vector<16x128xf32>
    %74 = arith.mulf %59, %73 : vector<16x128xf32>
    %75 = arith.addf %58, %74 : vector<16x128xf32>
    %c7_27 = arith.constant 7 : index
    %c129 = arith.constant 129 : index
    %76 = vector.load %arg8[%c7_27, %c129] : memref<32x384xf32, #tpu.memory_space<vmem>>, vector<16x128xf32>
    %c2 = arith.constant 2 : index
    %77 = memref.load %arg2[%c2] : memref<36xf32, #tpu.memory_space<smem>>
    %78 = vector.broadcast %77 : f32 to vector<16x128xf32>
    %79 = arith.mulf %76, %78 : vector<16x128xf32>
    %80 = arith.addf %63, %79 : vector<16x128xf32>
    %c11 = arith.constant 11 : index
    %81 = memref.load %arg2[%c11] : memref<36xf32, #tpu.memory_space<smem>>
    %82 = vector.broadcast %81 : f32 to vector<16x128xf32>
    %83 = arith.mulf %76, %82 : vector<16x128xf32>
    %84 = arith.addf %67, %83 : vector<16x128xf32>
    %c20 = arith.constant 20 : index
    %85 = memref.load %arg2[%c20] : memref<36xf32, #tpu.memory_space<smem>>
    %86 = vector.broadcast %85 : f32 to vector<16x128xf32>
    %87 = arith.mulf %76, %86 : vector<16x128xf32>
    %88 = arith.addf %71, %87 : vector<16x128xf32>
    %c29 = arith.constant 29 : index
    %89 = memref.load %arg2[%c29] : memref<36xf32, #tpu.memory_space<smem>>
    %90 = vector.broadcast %89 : f32 to vector<16x128xf32>
    %91 = arith.mulf %76, %90 : vector<16x128xf32>
    %92 = arith.addf %75, %91 : vector<16x128xf32>
    %c8_28 = arith.constant 8 : index
    %c127_29 = arith.constant 127 : index
    %93 = vector.load %arg8[%c8_28, %c127_29] : memref<32x384xf32, #tpu.memory_space<vmem>>, vector<16x128xf32>
    %c3 = arith.constant 3 : index
    %94 = memref.load %arg2[%c3] : memref<36xf32, #tpu.memory_space<smem>>
    %95 = vector.broadcast %94 : f32 to vector<16x128xf32>
    %96 = arith.mulf %93, %95 : vector<16x128xf32>
    %97 = arith.addf %80, %96 : vector<16x128xf32>
    %c12 = arith.constant 12 : index
    %98 = memref.load %arg2[%c12] : memref<36xf32, #tpu.memory_space<smem>>
    %99 = vector.broadcast %98 : f32 to vector<16x128xf32>
    %100 = arith.mulf %93, %99 : vector<16x128xf32>
    %101 = arith.addf %84, %100 : vector<16x128xf32>
    %c21 = arith.constant 21 : index
    %102 = memref.load %arg2[%c21] : memref<36xf32, #tpu.memory_space<smem>>
    %103 = vector.broadcast %102 : f32 to vector<16x128xf32>
    %104 = arith.mulf %93, %103 : vector<16x128xf32>
    %105 = arith.addf %88, %104 : vector<16x128xf32>
    %c30 = arith.constant 30 : index
    %106 = memref.load %arg2[%c30] : memref<36xf32, #tpu.memory_space<smem>>
    %107 = vector.broadcast %106 : f32 to vector<16x128xf32>
    %108 = arith.mulf %93, %107 : vector<16x128xf32>
    %109 = arith.addf %92, %108 : vector<16x128xf32>
    %c8_30 = arith.constant 8 : index
    %c128_31 = arith.constant 128 : index
    %110 = vector.load %arg8[%c8_30, %c128_31] : memref<32x384xf32, #tpu.memory_space<vmem>>, vector<16x128xf32>
    %c4 = arith.constant 4 : index
    %111 = memref.load %arg2[%c4] : memref<36xf32, #tpu.memory_space<smem>>
    %112 = vector.broadcast %111 : f32 to vector<16x128xf32>
    %113 = arith.mulf %110, %112 : vector<16x128xf32>
    %114 = arith.addf %97, %113 : vector<16x128xf32>
    %c13 = arith.constant 13 : index
    %115 = memref.load %arg2[%c13] : memref<36xf32, #tpu.memory_space<smem>>
    %116 = vector.broadcast %115 : f32 to vector<16x128xf32>
    %117 = arith.mulf %110, %116 : vector<16x128xf32>
    %118 = arith.addf %101, %117 : vector<16x128xf32>
    %c22 = arith.constant 22 : index
    %119 = memref.load %arg2[%c22] : memref<36xf32, #tpu.memory_space<smem>>
    %120 = vector.broadcast %119 : f32 to vector<16x128xf32>
    %121 = arith.mulf %110, %120 : vector<16x128xf32>
    %122 = arith.addf %105, %121 : vector<16x128xf32>
    %c31 = arith.constant 31 : index
    %123 = memref.load %arg2[%c31] : memref<36xf32, #tpu.memory_space<smem>>
    %124 = vector.broadcast %123 : f32 to vector<16x128xf32>
    %125 = arith.mulf %110, %124 : vector<16x128xf32>
    %126 = arith.addf %109, %125 : vector<16x128xf32>
    %c8_32 = arith.constant 8 : index
    %c129_33 = arith.constant 129 : index
    %127 = vector.load %arg8[%c8_32, %c129_33] : memref<32x384xf32, #tpu.memory_space<vmem>>, vector<16x128xf32>
    %c5 = arith.constant 5 : index
    %128 = memref.load %arg2[%c5] : memref<36xf32, #tpu.memory_space<smem>>
    %129 = vector.broadcast %128 : f32 to vector<16x128xf32>
    %130 = arith.mulf %127, %129 : vector<16x128xf32>
    %131 = arith.addf %114, %130 : vector<16x128xf32>
    %c14 = arith.constant 14 : index
    %132 = memref.load %arg2[%c14] : memref<36xf32, #tpu.memory_space<smem>>
    %133 = vector.broadcast %132 : f32 to vector<16x128xf32>
    %134 = arith.mulf %127, %133 : vector<16x128xf32>
    %135 = arith.addf %118, %134 : vector<16x128xf32>
    %c23 = arith.constant 23 : index
    %136 = memref.load %arg2[%c23] : memref<36xf32, #tpu.memory_space<smem>>
    %137 = vector.broadcast %136 : f32 to vector<16x128xf32>
    %138 = arith.mulf %127, %137 : vector<16x128xf32>
    %139 = arith.addf %122, %138 : vector<16x128xf32>
    %c32 = arith.constant 32 : index
    %140 = memref.load %arg2[%c32] : memref<36xf32, #tpu.memory_space<smem>>
    %141 = vector.broadcast %140 : f32 to vector<16x128xf32>
    %142 = arith.mulf %127, %141 : vector<16x128xf32>
    %143 = arith.addf %126, %142 : vector<16x128xf32>
    %c9_34 = arith.constant 9 : index
    %c127_35 = arith.constant 127 : index
    %144 = vector.load %arg8[%c9_34, %c127_35] : memref<32x384xf32, #tpu.memory_space<vmem>>, vector<16x128xf32>
    %c6 = arith.constant 6 : index
    %145 = memref.load %arg2[%c6] : memref<36xf32, #tpu.memory_space<smem>>
    %146 = vector.broadcast %145 : f32 to vector<16x128xf32>
    %147 = arith.mulf %144, %146 : vector<16x128xf32>
    %148 = arith.addf %131, %147 : vector<16x128xf32>
    %c15 = arith.constant 15 : index
    %149 = memref.load %arg2[%c15] : memref<36xf32, #tpu.memory_space<smem>>
    %150 = vector.broadcast %149 : f32 to vector<16x128xf32>
    %151 = arith.mulf %144, %150 : vector<16x128xf32>
    %152 = arith.addf %135, %151 : vector<16x128xf32>
    %c24_36 = arith.constant 24 : index
    %153 = memref.load %arg2[%c24_36] : memref<36xf32, #tpu.memory_space<smem>>
    %154 = vector.broadcast %153 : f32 to vector<16x128xf32>
    %155 = arith.mulf %144, %154 : vector<16x128xf32>
    %156 = arith.addf %139, %155 : vector<16x128xf32>
    %c33 = arith.constant 33 : index
    %157 = memref.load %arg2[%c33] : memref<36xf32, #tpu.memory_space<smem>>
    %158 = vector.broadcast %157 : f32 to vector<16x128xf32>
    %159 = arith.mulf %144, %158 : vector<16x128xf32>
    %160 = arith.addf %143, %159 : vector<16x128xf32>
    %c9_37 = arith.constant 9 : index
    %c128_38 = arith.constant 128 : index
    %161 = vector.load %arg8[%c9_37, %c128_38] : memref<32x384xf32, #tpu.memory_space<vmem>>, vector<16x128xf32>
    %c7_39 = arith.constant 7 : index
    %162 = memref.load %arg2[%c7_39] : memref<36xf32, #tpu.memory_space<smem>>
    %163 = vector.broadcast %162 : f32 to vector<16x128xf32>
    %164 = arith.mulf %161, %163 : vector<16x128xf32>
    %165 = arith.addf %148, %164 : vector<16x128xf32>
    %c16 = arith.constant 16 : index
    %166 = memref.load %arg2[%c16] : memref<36xf32, #tpu.memory_space<smem>>
    %167 = vector.broadcast %166 : f32 to vector<16x128xf32>
    %168 = arith.mulf %161, %167 : vector<16x128xf32>
    %169 = arith.addf %152, %168 : vector<16x128xf32>
    %c25 = arith.constant 25 : index
    %170 = memref.load %arg2[%c25] : memref<36xf32, #tpu.memory_space<smem>>
    %171 = vector.broadcast %170 : f32 to vector<16x128xf32>
    %172 = arith.mulf %161, %171 : vector<16x128xf32>
    %173 = arith.addf %156, %172 : vector<16x128xf32>
    %c34 = arith.constant 34 : index
    %174 = memref.load %arg2[%c34] : memref<36xf32, #tpu.memory_space<smem>>
    %175 = vector.broadcast %174 : f32 to vector<16x128xf32>
    %176 = arith.mulf %161, %175 : vector<16x128xf32>
    %177 = arith.addf %160, %176 : vector<16x128xf32>
    %c9_40 = arith.constant 9 : index
    %c129_41 = arith.constant 129 : index
    %178 = vector.load %arg8[%c9_40, %c129_41] : memref<32x384xf32, #tpu.memory_space<vmem>>, vector<16x128xf32>
    %c8_42 = arith.constant 8 : index
    %179 = memref.load %arg2[%c8_42] : memref<36xf32, #tpu.memory_space<smem>>
    %180 = vector.broadcast %179 : f32 to vector<16x128xf32>
    %181 = arith.mulf %178, %180 : vector<16x128xf32>
    %182 = arith.addf %165, %181 : vector<16x128xf32>
    %c17 = arith.constant 17 : index
    %183 = memref.load %arg2[%c17] : memref<36xf32, #tpu.memory_space<smem>>
    %184 = vector.broadcast %183 : f32 to vector<16x128xf32>
    %185 = arith.mulf %178, %184 : vector<16x128xf32>
    %186 = arith.addf %169, %185 : vector<16x128xf32>
    %c26 = arith.constant 26 : index
    %187 = memref.load %arg2[%c26] : memref<36xf32, #tpu.memory_space<smem>>
    %188 = vector.broadcast %187 : f32 to vector<16x128xf32>
    %189 = arith.mulf %178, %188 : vector<16x128xf32>
    %190 = arith.addf %173, %189 : vector<16x128xf32>
    %c35 = arith.constant 35 : index
    %191 = memref.load %arg2[%c35] : memref<36xf32, #tpu.memory_space<smem>>
    %192 = vector.broadcast %191 : f32 to vector<16x128xf32>
    %193 = arith.mulf %178, %192 : vector<16x128xf32>
    %194 = arith.addf %177, %193 : vector<16x128xf32>
    %c0_43 = arith.constant 0 : index
    %195 = memref.load %arg3[%c0_43] : memref<4xf32, #tpu.memory_space<smem>>
    %196 = vector.broadcast %195 : f32 to vector<16x128xf32>
    %197 = arith.addf %182, %196 : vector<16x128xf32>
    %198 = arith.negf %197 : vector<16x128xf32>
    %199 = math.exp %198 : vector<16x128xf32>
    %cst_44 = arith.constant 1.000000e+00 : f32
    %200 = vector.broadcast %cst_44 : f32 to vector<16x128xf32>
    %201 = arith.addf %200, %199 : vector<16x128xf32>
    %202 = arith.divf %200, %201 : vector<16x128xf32>
    %c0_45 = arith.constant 0 : index
    %c0_46 = arith.constant 0 : index
    %c0_47 = arith.constant 0 : index
    %c0_48 = arith.constant 0 : index
    %203 = vector.load %arg7[%c0_45, %c0_46, %c0_47, %c0_48] : memref<1x4x16x128xf32, #tpu.memory_space<vmem>>, vector<1x1x16x128xf32>
    %204 = vector.shape_cast %203 : vector<1x1x16x128xf32> to vector<16x128xf32>
    %205 = vector.shape_cast %202 : vector<16x128xf32> to vector<1x1x16x128xf32>
    tpu.vector_store %arg7[%c0_45, %c0_46, %c0_47, %c0_48], %205 {strides = array<i32>} : memref<1x4x16x128xf32, #tpu.memory_space<vmem>>, vector<1x1x16x128xf32>,
    %c1_49 = arith.constant 1 : index
    %206 = memref.load %arg3[%c1_49] : memref<4xf32, #tpu.memory_space<smem>>
    %207 = vector.broadcast %206 : f32 to vector<16x128xf32>
    %208 = arith.addf %186, %207 : vector<16x128xf32>
    %209 = arith.negf %208 : vector<16x128xf32>
    %210 = math.exp %209 : vector<16x128xf32>
    %cst_50 = arith.constant 1.000000e+00 : f32
    %211 = vector.broadcast %cst_50 : f32 to vector<16x128xf32>
    %212 = arith.addf %211, %210 : vector<16x128xf32>
    %213 = arith.divf %211, %212 : vector<16x128xf32>
    %c0_51 = arith.constant 0 : index
    %c1_52 = arith.constant 1 : index
    %c0_53 = arith.constant 0 : index
    %c0_54 = arith.constant 0 : index
    %214 = vector.load %arg7[%c0_51, %c1_52, %c0_53, %c0_54] : memref<1x4x16x128xf32, #tpu.memory_space<vmem>>, vector<1x1x16x128xf32>
    %215 = vector.shape_cast %214 : vector<1x1x16x128xf32> to vector<16x128xf32>
    %216 = vector.shape_cast %213 : vector<16x128xf32> to vector<1x1x16x128xf32>
    tpu.vector_store %arg7[%c0_51, %c1_52, %c0_53, %c0_54], %216 {strides = array<i32>} : memref<1x4x16x128xf32, #tpu.memory_space<vmem>>, vector<1x1x16x128xf32>,
    %c2_55 = arith.constant 2 : index
    %217 = memref.load %arg3[%c2_55] : memref<4xf32, #tpu.memory_space<smem>>
    %218 = vector.broadcast %217 : f32 to vector<16x128xf32>
    %219 = arith.addf %190, %218 : vector<16x128xf32>
    %220 = arith.negf %219 : vector<16x128xf32>
    %221 = math.exp %220 : vector<16x128xf32>
    %cst_56 = arith.constant 1.000000e+00 : f32
    %222 = vector.broadcast %cst_56 : f32 to vector<16x128xf32>
    %223 = arith.addf %222, %221 : vector<16x128xf32>
    %224 = arith.divf %222, %223 : vector<16x128xf32>
    %c0_57 = arith.constant 0 : index
    %c2_58 = arith.constant 2 : index
    %c0_59 = arith.constant 0 : index
    %c0_60 = arith.constant 0 : index
    %225 = vector.load %arg7[%c0_57, %c2_58, %c0_59, %c0_60] : memref<1x4x16x128xf32, #tpu.memory_space<vmem>>, vector<1x1x16x128xf32>
    %226 = vector.shape_cast %225 : vector<1x1x16x128xf32> to vector<16x128xf32>
    %227 = vector.shape_cast %224 : vector<16x128xf32> to vector<1x1x16x128xf32>
    tpu.vector_store %arg7[%c0_57, %c2_58, %c0_59, %c0_60], %227 {strides = array<i32>} : memref<1x4x16x128xf32, #tpu.memory_space<vmem>>, vector<1x1x16x128xf32>,
    %c3_61 = arith.constant 3 : index
    %228 = memref.load %arg3[%c3_61] : memref<4xf32, #tpu.memory_space<smem>>
    %229 = vector.broadcast %228 : f32 to vector<16x128xf32>
    %230 = arith.addf %194, %229 : vector<16x128xf32>
    %231 = arith.negf %230 : vector<16x128xf32>
    %232 = math.exp %231 : vector<16x128xf32>
    %cst_62 = arith.constant 1.000000e+00 : f32
    %233 = vector.broadcast %cst_62 : f32 to vector<16x128xf32>
    %234 = arith.addf %233, %232 : vector<16x128xf32>
    %235 = arith.divf %233, %234 : vector<16x128xf32>
    %c0_63 = arith.constant 0 : index
    %c3_64 = arith.constant 3 : index
    %c0_65 = arith.constant 0 : index
    %c0_66 = arith.constant 0 : index
    %236 = vector.load %arg7[%c0_63, %c3_64, %c0_65, %c0_66] : memref<1x4x16x128xf32, #tpu.memory_space<vmem>>, vector<1x1x16x128xf32>
    %237 = vector.shape_cast %236 : vector<1x1x16x128xf32> to vector<16x128xf32>
    %238 = vector.shape_cast %235 : vector<16x128xf32> to vector<1x1x16x128xf32>
    tpu.vector_store %arg7[%c0_63, %c3_64, %c0_65, %c0_66], %238 {strides = array<i32>} : memref<1x4x16x128xf32, #tpu.memory_space<vmem>>, vector<1x1x16x128xf32>,
    return
  }
  func.func @transform_0(%arg0: i32) -> i32 {
    %c0_i32 = arith.constant 0 : i32
    %c0_i32_0 = arith.constant 0 : i32
    return %c0_i32 : i32
  }
  func.func @transform_1(%arg0: i32) -> i32 {
    %c0_i32 = arith.constant 0 : i32
    %c0_i32_0 = arith.constant 0 : i32
    return %c0_i32 : i32
  }
  func.func @transform_2(%arg0: i32) -> i32 {
    %c0_i32 = arith.constant 0 : i32
    %c0_i32_0 = arith.constant 0 : i32
    return %c0_i32 : i32
  }
  func.func @transform_3(%arg0: i32) -> (i32, i32, i32) {
    %c0_i32 = arith.constant 0 : i32
    %c0_i32_0 = arith.constant 0 : i32
    %c0_i32_1 = arith.constant 0 : i32
    %c0_i32_2 = arith.constant 0 : i32
    return %c0_i32, %c0_i32_0, %c0_i32_1 : i32, i32, i32
  }
  func.func @transform_4(%arg0: i32) -> (i32, i32, i32) {
    %c0_i32 = arith.constant 0 : i32
    %c0_i32_0 = arith.constant 0 : i32
    %c0_i32_1 = arith.constant 0 : i32
    return %arg0, %c0_i32, %c0_i32_0 : i32, i32, i32
  }
  func.func @transform_5(%arg0: i32) -> (i32, i32, i32) {
    %c0_i32 = arith.constant 0 : i32
    %c0_i32_0 = arith.constant 0 : i32
    %c0_i32_1 = arith.constant 0 : i32
    return %arg0, %c0_i32, %c0_i32_0 : i32, i32, i32
  }
  func.func @transform_6(%arg0: i32) -> (i32, i32, i32, i32) {
    %c0_i32 = arith.constant 0 : i32
    %c0_i32_0 = arith.constant 0 : i32
    %c0_i32_1 = arith.constant 0 : i32
    %c0_i32_2 = arith.constant 0 : i32
    return %arg0, %c0_i32, %c0_i32_0, %c0_i32_1 : i32, i32, i32, i32
  }
}

</mosaic_0001>

<llo_original>
// kernel: connect_net_v2_forward.2
$region0: #{connect_net_v2_forward.2}
  #allocation0 [shape = 'u32[]', space=smem, size = 0x4, offset = 0x4, fixed_abs, tag = 'smem constant byte address 0x4 - core index']
  #allocation1 [shape = 'u32[72,128]{1,0:T(1,128)}', space=vmem, size = 0x9000, scoped, tag = 'internal scratch']
  %s0 = inlined_call_operand.vmem [shape: f32[2,32,16], index: 0, kind: input, shape index: {}]
  %s1 = inlined_call_operand.vmem [shape: f32[2,32,128], index: 1, kind: input, shape index: {}]
  %s2 = inlined_call_operand.vmem [shape: f32[2,1,2], index: 2, kind: output, shape index: {}]
  %s3 = sld [smem:[#allocation0]]
  $region41: #{connect_net_v2_forward.2} parent=0
    _
  %s5 = ssub.s32 1, %s3
  %s6 = scalar_select 0, %s5, %s3
  loop: start=0, step=1, limit=4
  $region2: #{connect_net_v2_forward.2} parent=0 // loop_pre_header
    _
  $region3: #{connect_net_v2_forward.2} parent=0 // loop_header
    %s8 = sphi 0, %s12
    %p9 = scmp.ge.s32.totalorder %s8, 4
    %s18 = sphi 0, %s20
    %s21 = sphi 0, %s18
    %s22 = sphi 0, %s21
    %s38 = sphi 0, %s22
    %s44 = sphi 0, %s46
    %s47 = sphi 0, %s44
    %s48 = sphi 0, %s47
    %s64 = sphi 0, %s48
    %s70 = sphi 0, %s72
    %s73 = sphi 0, %s70
    %s74 = sphi 0, %s73
    %s90 = sphi 0, %s74
  $region4: #{connect_net_v2_forward.2} parent=0 // loop_header_branch
    %11 = sbr.rel (%p9) target = $region8
  $region5: #{connect_net_v2_forward.2} parent=0 // loop_body
    %s13 = ssub.s32 %s8, 1
    %s14 = ssub.s32 %s8, 2
    %s15 = sadd.s32 %s8, 1
    %s16 = ssub.s32 %s8, %s15
    %p17 = scmp.eq.s32.totalorder %s16, 0
    %s19 = sadd.s32 %s18, 1
    %s20 = scalar_select %p17, %s18, %s19
    %p23 = pneg %p17
    %p24 = scmp.eq.s32.totalorder %s8, 1
    %p25 = por %p23, %p24
    %p26 = scmp.ne.s32.totalorder %s18, %s21
    %p27 = scmp.eq.s32.totalorder %s8, 0
    %p28 = por %p26, %p27
    %p29 = scmp.ne.s32.totalorder %s18, %s21
    %p30 = scmp.eq.s32.totalorder %s13, 1
    %p31 = por %p29, %p30
    %p32 = scmp.ne.s32.totalorder %s21, %s22
    %p33 = scmp.eq.s32.totalorder %s13, 0
    %p34 = por %p32, %p33
    %p35 = scmp.ne.s32.totalorder %s21, %s22
    %p36 = scmp.eq.s32.totalorder %s14, 1
    %p37 = por %p35, %p36
    %p39 = scmp.ne.s32.totalorder %s22, %s38
    %p40 = scmp.eq.s32.totalorder %s14, 0
    %p41 = por %p39, %p40
    %s42 = ssub.s32 %s8, %s15
    %p43 = scmp.eq.s32.totalorder %s42, 0
    %s45 = sadd.s32 %s44, 1
    %s46 = scalar_select %p43, %s44, %s45
    %p49 = pneg %p43
    %p50 = scmp.eq.s32.totalorder %s8, 1
    %p51 = por %p49, %p50
    %p52 = scmp.ne.s32.totalorder %s44, %s47
    %p53 = scmp.eq.s32.totalorder %s8, 0
    %p54 = por %p52, %p53
    %p55 = scmp.ne.s32.totalorder %s44, %s47
    %p56 = scmp.eq.s32.totalorder %s13, 1
    %p57 = por %p55, %p56
    %p58 = scmp.ne.s32.totalorder %s47, %s48
    %p59 = scmp.eq.s32.totalorder %s13, 0
    %p60 = por %p58, %p59
    %p61 = scmp.ne.s32.totalorder %s47, %s48
    %p62 = scmp.eq.s32.totalorder %s14, 1
    %p63 = por %p61, %p62
    %p65 = scmp.ne.s32.totalorder %s48, %s64
    %p66 = scmp.eq.s32.totalorder %s14, 0
    %p67 = por %p65, %p66
    %s68 = ssub.s32 %s8, %s15
    %p69 = scmp.eq.s32.totalorder %s68, 0
    %s71 = sadd.s32 %s70, 1
    %s72 = scalar_select %p69, %s70, %s71
    %p75 = pneg %p69
    %p76 = scmp.eq.s32.totalorder %s8, 1
    %p77 = por %p75, %p76
    %p78 = scmp.ne.s32.totalorder %s70, %s73
    %p79 = scmp.eq.s32.totalorder %s8, 0
    %p80 = por %p78, %p79
    %p81 = scmp.ne.s32.totalorder %s70, %s73
    %p82 = scmp.eq.s32.totalorder %s13, 1
    %p83 = por %p81, %p82
    %p84 = scmp.ne.s32.totalorder %s73, %s74
    %p85 = scmp.eq.s32.totalorder %s13, 0
    %p86 = por %p84, %p85
    %p87 = scmp.ne.s32.totalorder %s73, %s74
    %p88 = scmp.eq.s32.totalorder %s14, 1
    %p89 = por %p87, %p88
    %p91 = scmp.ne.s32.totalorder %s74, %s90
    %p92 = scmp.eq.s32.totalorder %s14, 0
    %p93 = por %p91, %p92
    %p94 = scmp.le.s32.totalorder 1, %s8
    %p95 = scmp.lt.s32.totalorder %s8, 3
    %p96 = pnand %p94, %p95
    %p97 = pneg %p96
    // Predicated region
    $region9: #{connect_net_v2_forward.2} parent=5 // pred_check
      _
    $region10: #{connect_net_v2_forward.2} parent=5 // pred_check_branch
      %99 = sbr.rel (%p96) target = $region12
    $region11: #{connect_net_v2_forward.2} parent=5 // pred_region
      %s100 = ssub.s32 %s8, 1
    $region12: #{connect_net_v2_forward.2} parent=5 // pred_fallthru
      _
    %p101 = scmp.lt.s32.totalorder %s8, 2
    // Predicated region
    $region13: #{connect_net_v2_forward.2} parent=5 // pred_check
      %p102 = pneg %p101
    $region14: #{connect_net_v2_forward.2} parent=5 // pred_check_branch
      %104 = sbr.rel (%p102) target = $region16
    $region15: #{connect_net_v2_forward.2} parent=5 // pred_region
      // Predicated region
      $region17: #{connect_net_v2_forward.2} parent=15 // pred_check
        %p105 = pneg %p28
      $region18: #{connect_net_v2_forward.2} parent=15 // pred_check_branch
        %107 = sbr.rel (%p105) target = $region20
      $region19: #{connect_net_v2_forward.2} parent=15 // pred_region
        %p108 = scmp.lt.s32.totalorder %s8, 1
        %s109 = scalar_select %p108, %s8, 1
        %s110 = smul.addr %s109, 4
        %s111 = smul.addr %s110, 8
        %s112 = scalar_lea.vmem %s0, %s111
      $region20: #{connect_net_v2_forward.2} parent=15 // pred_fallthru
        _
      // Predicated region
      $region21: #{connect_net_v2_forward.2} parent=15 // pred_check
        %p113 = pneg %p54
      $region22: #{connect_net_v2_forward.2} parent=15 // pred_check_branch
        %115 = sbr.rel (%p113) target = $region24
      $region23: #{connect_net_v2_forward.2} parent=15 // pred_region
        %p116 = scmp.lt.s32.totalorder %s8, 1
        %s117 = scalar_select %p116, %s8, 1
        %s118 = smul.addr %s117, 4
        %s119 = smul.addr %s118, 8
        %s120 = scalar_lea.vmem %s1, %s119
      $region24: #{connect_net_v2_forward.2} parent=15 // pred_fallthru
        _
    $region16: #{connect_net_v2_forward.2} parent=5 // pred_fallthru
      _
    %p121 = scmp.le.s32.totalorder 1, %s8
    %p122 = scmp.lt.s32.totalorder %s8, 3
    %p123 = pnand %p121, %p122
    %p124 = pneg %p123
    // Predicated region
    $region25: #{connect_net_v2_forward.2} parent=5 // pred_check
      _
    $region26: #{connect_net_v2_forward.2} parent=5 // pred_check_branch
      %126 = sbr.rel (%p123) target = $region28
    $region27: #{connect_net_v2_forward.2} parent=5 // pred_region
      %s127 = ssub.s32 %s8, 1
      %p128 = scmp.lt.s32.totalorder %s13, 1
      %s129 = scalar_select %p128, %s13, 1
      %s130 = smul.addr %s129, 4
      %s131 = smul.addr %s130, 8
      %s132 = scalar_lea.vmem %s0, %s131
      %p133 = pneg %p34
      %p134 = pneg %p31
      %p135 = scmp.lt.s32.totalorder %s13, 1
      %s136 = scalar_select %p135, %s13, 1
      %s137 = smul.addr %s136, 4
      %s138 = smul.addr %s137, 8
      %s139 = scalar_lea.vmem %s1, %s138
      %p140 = pneg %p60
      %p141 = pneg %p57
      %p142 = pneg %p86
      %p143 = pneg %p83
      %p144 = scmp.lt.s32.totalorder %s13, 1
      %s145 = scalar_select %p144, %s13, 1
      %s146 = scalar_lea.vmem %s2, %s145
      %p147 = scmp.lt.s32.totalorder %s13, 1
      %s148 = scalar_select %p147, %s13, 1
      %s149 = smul.addr %s148, 4
      %s150 = smul.addr %s149, 8
      %s151 = scalar_lea.vmem %s0, %s150
      %p152 = scmp.lt.s32.totalorder %s13, 1
      %s153 = scalar_select %p152, %s13, 1
      %s154 = smul.addr %s153, 4
      %s155 = smul.addr %s154, 8
      %s156 = scalar_lea.vmem %s1, %s155
      %p157 = scmp.lt.s32.totalorder %s13, 1
      %s158 = scalar_select %p157, %s13, 1
      %s159 = scalar_lea.vmem %s2, %s158
      %v161 = vld [vmem:[%s151] sm:$0xff]
      %v162 = vld [vmem:[%s151 + $0x8] sm:$0xff]
      %v163 = vld [vmem:[%s151 + $0x10] sm:$0xff]
      %v164 = vld [vmem:[%s151 + $0x18] sm:$0xff]
      %v165 = vpack.c.bf16 %v162, %v161
      %v166 = vpack.c.bf16 %v164, %v163
      %v167 = vld [vmem:[%s156] sm:$0xff]
      %v168 = vld [vmem:[%s156 + $0x8] sm:$0xff]
      %v169 = vld [vmem:[%s156 + $0x10] sm:$0xff]
      %v170 = vld [vmem:[%s156 + $0x18] sm:$0xff]
      %v171 = vpack.c.bf16 %v168, %v167
      %v172 = vpack.c.bf16 %v170, %v169
      %173 = vxpose.xlu0.c.b16.start [1/8] %v165, 128
      %174 = vxpose.xlu0.c.b16.cont [2/8] %v166, 128
      %175 = vxpose.xlu0.c.b16.cont [3/8] 0, 128
      %176 = vxpose.xlu0.c.b16.cont [4/8] 0, 128
      %177 = vxpose.xlu0.c.b16.cont [5/8] 0, 128
      %178 = vxpose.xlu0.c.b16.cont [6/8] 0, 128
      %179 = vxpose.xlu0.c.b16.cont [7/8] 0, 128
      %180 = vxpose.xlu0.c.b16.end [8/8] 0, 128
      %v181 = vpop.trf.xlu0
      %v182 = vpop.trf.xlu0
      %v183 = vpop.trf.xlu0
      %v184 = vpop.trf.xlu0
      %v185 = vpop.trf.xlu0
      %v186 = vpop.trf.xlu0
      %v187 = vpop.trf.xlu0
      %v188 = vpop.trf.xlu0
      %vm189 = vcmask 261120
      %v191 = vsel %vm189, %v181, 0
      %193 = vmatpush.bf16.msra.mxu0 0
      %194 = vmatpush.bf16.msra.mxu0 0
      %195 = vmatpush.bf16.msra.mxu0 0
      %196 = vmatpush.bf16.msra.mxu0 0
      %197 = vmatpush.bf16.msra.mxu0 0
      %198 = vmatpush.bf16.msra.mxu0 0
      %199 = vmatpush.bf16.msra.mxu0 %v172
      %200 = vmatpush.bf16.msra.mxu0 %v171
      %201 = vmatmul.bf16.gmra.mxu0 %v191
      %v202 = vpop.f32.mrf.mxu0
      %v203 = vadd.f32 0.0, %v202
      %v204 = vpop.f32.mrf.mxu0
      %v205 = vadd.f32 0.0, %v204
      %206 = vdwg.mxu0
      %207 = vadd.xlane.f32.xlu0 %v203
      %v208 = vpop.xlane.xlu0 %207
      %209 = vadd.xlane.f32.xlu0 %v205
      %v210 = vpop.xlane.xlu0 %209
      %v211 = vadd.f32 %v208, %v210
      %v212 = vrot.slane %v211, 4
      %v213 = vadd.f32 %v211, %v212
      %v214 = vrot.slane %v213, 2
      %v215 = vadd.f32 %v213, %v214
      %v216 = vrot.slane %v215, 1
      %v217 = vadd.f32 %v215, %v216
      %v218 = vmul.f32 %v217, 0.00048828125
      %v219 = vsub.f32 %v203, %v218
      %v220 = vsub.f32 %v205, %v218
      %v221 = vmul.f32 %v219, %v219
      %v222 = vmul.f32 %v220, %v220
      %223 = vadd.xlane.f32.xlu0 %v221
      %v224 = vpop.xlane.xlu0 %223
      %225 = vadd.xlane.f32.xlu0 %v222
      %v226 = vpop.xlane.xlu0 %225
      %v227 = vadd.f32 %v224, %v226
      %v228 = vrot.slane %v227, 4
      %v229 = vadd.f32 %v227, %v228
      %v230 = vrot.slane %v229, 2
      %v231 = vadd.f32 %v229, %v230
      %v232 = vrot.slane %v231, 1
      %v233 = vadd.f32 %v231, %v232
      %vm234 = vcmask 0
      %235 = vst.msk [vmem:[%s159] sm:$0x1] %vm234, %v218
      %vm236 = vcmask 8200
      %237 = vst.msk [vmem:[%s159] sm:$0x1] %vm236, %v233
      %p238 = scmp.lt.s32.totalorder %s13, 1
      %s239 = scalar_select %p238, %s13, 1
      %s240 = scalar_lea.vmem %s2, %s239
      // Predicated region
      $region29: #{connect_net_v2_forward.2} parent=27 // pred_check
        %p241 = pneg %p83
      $region30: #{connect_net_v2_forward.2} parent=27 // pred_check_branch
        %243 = sbr.rel (%p241) target = $region32
      $region31: #{connect_net_v2_forward.2} parent=27 // pred_region
        _
      $region32: #{connect_net_v2_forward.2} parent=27 // pred_fallthru
        _
    $region28: #{connect_net_v2_forward.2} parent=5 // pred_fallthru
      _
    %p244 = scmp.le.s32.totalorder 2, %s8
    // Predicated region
    $region33: #{connect_net_v2_forward.2} parent=5 // pred_check
      %p245 = pneg %p244
    $region34: #{connect_net_v2_forward.2} parent=5 // pred_check_branch
      %247 = sbr.rel (%p245) target = $region36
    $region35: #{connect_net_v2_forward.2} parent=5 // pred_region
      %s248 = ssub.s32 %s8, 2
      // Predicated region
      $region37: #{connect_net_v2_forward.2} parent=35 // pred_check
        %p249 = pneg %p89
      $region38: #{connect_net_v2_forward.2} parent=35 // pred_check_branch
        %251 = sbr.rel (%p249) target = $region40
      $region39: #{connect_net_v2_forward.2} parent=35 // pred_region
        %p252 = scmp.lt.s32.totalorder %s14, 1
        %s253 = scalar_select %p252, %s14, 1
        %s254 = scalar_lea.vmem %s2, %s253
      $region40: #{connect_net_v2_forward.2} parent=35 // pred_fallthru
        _
    $region36: #{connect_net_v2_forward.2} parent=5 // pred_fallthru
      _
  $region6: #{connect_net_v2_forward.2} parent=0 // loop_footer
    %s12 = sadd.s32 1, %s8
  $region7: #{connect_net_v2_forward.2} parent=0 // loop_footer_branch
    %7 = sbr.rel target = $region3
  $region8: #{connect_net_v2_forward.2} parent=0 // loop_exit
    _

// kernel: connect_net_v2_forward.3
$region0: #{connect_net_v2_forward.3}
  #allocation0 [shape = 'u32[]', space=smem, size = 0x4, offset = 0x4, fixed_abs, tag = 'smem constant byte address 0x4 - core index']
  #allocation1 [shape = 'u32[72,128]{1,0:T(1,128)}', space=vmem, size = 0x9000, scoped, tag = 'internal scratch']
  #allocation2 [shape = 'f32[32,384]{1,0:T(8,128)}', space=vmem, size = 0xc000, scoped, tag = 'scratch operand']
  %s0 = inlined_call_operand.vmem [shape: f32[2], index: 0, kind: input, shape index: {}]
  %s1 = inlined_call_operand.vmem [shape: f32[36], index: 1, kind: input, shape index: {}]
  %s2 = inlined_call_operand.vmem [shape: f32[4], index: 2, kind: input, shape index: {}]
  %s3 = inlined_call_operand.vmem [shape: f32[2,1,2], index: 3, kind: input, shape index: {}]
  %s4 = inlined_call_operand.vmem [shape: f32[2,32,16], index: 4, kind: input, shape index: {}]
  %s5 = inlined_call_operand.vmem [shape: f32[2,32,128], index: 5, kind: input, shape index: {}]
  %s6 = inlined_call_operand.hbm [shape: f32[2,4,16,128], index: 6, kind: output, shape index: {}]
  %s7 = sld [smem:[#allocation0]]
  $region69: #{connect_net_v2_forward.3} parent=0
    _
  %s9 = ssub.s32 1, %s7
  %s10 = scalar_select 0, %s9, %s7
  $region1: #{connect_net_v2_forward.3} parent=0
    #allocation3 [shape = 'u8[512]{0}', space=smem, size = 0x200, scoped, tag = 'input window, operand 0, single buffered']
    #allocation4 [shape = 's32[2]{0}', space=sflag, size = 0x8, scoped, tag = 'scoped memory for connect_net_v2_forward.3']
    #allocation5 [shape = 's32[2]{0}', space=sflag, size = 0x8, scoped, tag = 'scoped memory for connect_net_v2_forward.3']
    #allocation6 [shape = 'u8[512]{0}', space=smem, size = 0x200, scoped, tag = 'input window, operand 1, single buffered']
    #allocation7 [shape = 's32[1]{0}', space=sflag, size = 0x4, scoped, tag = 'scoped memory for connect_net_v2_forward.3']
    #allocation8 [shape = 'u8[512]{0}', space=smem, size = 0x200, scoped, tag = 'input window, operand 2, single buffered']
    #allocation9 [shape = 'u8[65536]{0}', space=vmem, size = 0x10000, scoped, tag = 'output window, operand 0']
    %11 = vsyncpa [#allocation5], 0
    %12 = vsyncpa [#allocation7], 0
    %13 = vsyncpa [#allocation4], 0
    %s14 = scalar_lea.sflag [#allocation4], 1
    %15 = vsyncpa %s14, 0
    loop: start=0, step=1, limit=4
    $region2: #{connect_net_v2_forward.3} parent=1 // loop_pre_header
      _
    $region3: #{connect_net_v2_forward.3} parent=1 // loop_header
      %s17 = sphi 0, %s21
      %p18 = scmp.ge.s32.totalorder %s17, 4
      %s25 = sphi 0, %s25
      %s27 = sphi 0, %s25
      %s28 = sphi 0, %s27
      %s42 = sphi 0, %s28
      %s46 = sphi 0, %s46
      %s48 = sphi 0, %s46
      %s49 = sphi 0, %s48
      %s63 = sphi 0, %s49
      %s67 = sphi 0, %s67
      %s69 = sphi 0, %s67
      %s70 = sphi 0, %s69
      %s84 = sphi 0, %s70
      %s88 = sphi 0, %s88
      %s90 = sphi 0, %s88
      %s91 = sphi 0, %s90
      %s105 = sphi 0, %s91
      %s111 = sphi 0, %s113
      %s114 = sphi 0, %s111
      %s115 = sphi 0, %s114
      %s131 = sphi 0, %s115
      %s137 = sphi 0, %s139
      %s140 = sphi 0, %s137
      %s141 = sphi 0, %s140
      %s157 = sphi 0, %s141
      %s163 = sphi 0, %s165
      %s166 = sphi 0, %s163
      %s167 = sphi 0, %s166
      %s183 = sphi 0, %s167
    $region4: #{connect_net_v2_forward.3} parent=1 // loop_header_branch
      %20 = sbr.rel (%p18) target = $region8
    $region5: #{connect_net_v2_forward.3} parent=1 // loop_body
      %s22 = ssub.s32 %s17, 1
      %s23 = ssub.s32 %s17, 2
      %s24 = sadd.s32 %s17, 1
      %s26 = sadd.s32 %s25, 1
      %p29 = scmp.eq.s32.totalorder %s17, 1
      %p30 = scmp.ne.s32.totalorder %s25, %s27
      %p31 = scmp.eq.s32.totalorder %s17, 0
      %p32 = por %p30, %p31
      %p33 = scmp.ne.s32.totalorder %s25, %s27
      %p34 = scmp.eq.s32.totalorder %s22, 1
      %p35 = por %p33, %p34
      %p36 = scmp.ne.s32.totalorder %s27, %s28
      %p37 = scmp.eq.s32.totalorder %s22, 0
      %p38 = por %p36, %p37
      %p39 = scmp.ne.s32.totalorder %s27, %s28
      %p40 = scmp.eq.s32.totalorder %s23, 1
      %p41 = por %p39, %p40
      %p43 = scmp.ne.s32.totalorder %s28, %s42
      %p44 = scmp.eq.s32.totalorder %s23, 0
      %p45 = por %p43, %p44
      %s47 = sadd.s32 %s46, 1
      %p50 = scmp.eq.s32.totalorder %s17, 1
      %p51 = scmp.ne.s32.totalorder %s46, %s48
      %p52 = scmp.eq.s32.totalorder %s17, 0
      %p53 = por %p51, %p52
      %p54 = scmp.ne.s32.totalorder %s46, %s48
      %p55 = scmp.eq.s32.totalorder %s22, 1
      %p56 = por %p54, %p55
      %p57 = scmp.ne.s32.totalorder %s48, %s49
      %p58 = scmp.eq.s32.totalorder %s22, 0
      %p59 = por %p57, %p58
      %p60 = scmp.ne.s32.totalorder %s48, %s49
      %p61 = scmp.eq.s32.totalorder %s23, 1
      %p62 = por %p60, %p61
      %p64 = scmp.ne.s32.totalorder %s49, %s63
      %p65 = scmp.eq.s32.totalorder %s23, 0
      %p66 = por %p64, %p65
      %s68 = sadd.s32 %s67, 1
      %p71 = scmp.eq.s32.totalorder %s17, 1
      %p72 = scmp.ne.s32.totalorder %s67, %s69
      %p73 = scmp.eq.s32.totalorder %s17, 0
      %p74 = por %p72, %p73
      %p75 = scmp.ne.s32.totalorder %s67, %s69
      %p76 = scmp.eq.s32.totalorder %s22, 1
      %p77 = por %p75, %p76
      %p78 = scmp.ne.s32.totalorder %s69, %s70
      %p79 = scmp.eq.s32.totalorder %s22, 0
      %p80 = por %p78, %p79
      %p81 = scmp.ne.s32.totalorder %s69, %s70
      %p82 = scmp.eq.s32.totalorder %s23, 1
      %p83 = por %p81, %p82
      %p85 = scmp.ne.s32.totalorder %s70, %s84
      %p86 = scmp.eq.s32.totalorder %s23, 0
      %p87 = por %p85, %p86
      %s89 = sadd.s32 %s88, 1
      %p92 = scmp.eq.s32.totalorder %s17, 1
      %p93 = scmp.ne.s32.totalorder %s88, %s90
      %p94 = scmp.eq.s32.totalorder %s17, 0
      %p95 = por %p93, %p94
      %p96 = scmp.ne.s32.totalorder %s88, %s90
      %p97 = scmp.eq.s32.totalorder %s22, 1
      %p98 = por %p96, %p97
      %p99 = scmp.ne.s32.totalorder %s90, %s91
      %p100 = scmp.eq.s32.totalorder %s22, 0
      %p101 = por %p99, %p100
      %p102 = scmp.ne.s32.totalorder %s90, %s91
      %p103 = scmp.eq.s32.totalorder %s23, 1
      %p104 = por %p102, %p103
      %p106 = scmp.ne.s32.totalorder %s91, %s105
      %p107 = scmp.eq.s32.totalorder %s23, 0
      %p108 = por %p106, %p107
      %s109 = ssub.s32 %s17, %s24
      %p110 = scmp.eq.s32.totalorder %s109, 0
      %s112 = sadd.s32 %s111, 1
      %s113 = scalar_select %p110, %s111, %s112
      %p116 = pneg %p110
      %p117 = scmp.eq.s32.totalorder %s17, 1
      %p118 = por %p116, %p117
      %p119 = scmp.ne.s32.totalorder %s111, %s114
      %p120 = scmp.eq.s32.totalorder %s17, 0
      %p121 = por %p119, %p120
      %p122 = scmp.ne.s32.totalorder %s111, %s114
      %p123 = scmp.eq.s32.totalorder %s22, 1
      %p124 = por %p122, %p123
      %p125 = scmp.ne.s32.totalorder %s114, %s115
      %p126 = scmp.eq.s32.totalorder %s22, 0
      %p127 = por %p125, %p126
      %p128 = scmp.ne.s32.totalorder %s114, %s115
      %p129 = scmp.eq.s32.totalorder %s23, 1
      %p130 = por %p128, %p129
      %p132 = scmp.ne.s32.totalorder %s115, %s131
      %p133 = scmp.eq.s32.totalorder %s23, 0
      %p134 = por %p132, %p133
      %s135 = ssub.s32 %s17, %s24
      %p136 = scmp.eq.s32.totalorder %s135, 0
      %s138 = sadd.s32 %s137, 1
      %s139 = scalar_select %p136, %s137, %s138
      %p142 = pneg %p136
      %p143 = scmp.eq.s32.totalorder %s17, 1
      %p144 = por %p142, %p143
      %p145 = scmp.ne.s32.totalorder %s137, %s140
      %p146 = scmp.eq.s32.totalorder %s17, 0
      %p147 = por %p145, %p146
      %p148 = scmp.ne.s32.totalorder %s137, %s140
      %p149 = scmp.eq.s32.totalorder %s22, 1
      %p150 = por %p148, %p149
      %p151 = scmp.ne.s32.totalorder %s140, %s141
      %p152 = scmp.eq.s32.totalorder %s22, 0
      %p153 = por %p151, %p152
      %p154 = scmp.ne.s32.totalorder %s140, %s141
      %p155 = scmp.eq.s32.totalorder %s23, 1
      %p156 = por %p154, %p155
      %p158 = scmp.ne.s32.totalorder %s141, %s157
      %p159 = scmp.eq.s32.totalorder %s23, 0
      %p160 = por %p158, %p159
      %s161 = ssub.s32 %s17, %s24
      %p162 = scmp.eq.s32.totalorder %s161, 0
      %s164 = sadd.s32 %s163, 1
      %s165 = scalar_select %p162, %s163, %s164
      %p168 = pneg %p162
      %p169 = scmp.eq.s32.totalorder %s17, 1
      %p170 = por %p168, %p169
      %p171 = scmp.ne.s32.totalorder %s163, %s166
      %p172 = scmp.eq.s32.totalorder %s17, 0
      %p173 = por %p171, %p172
      %p174 = scmp.ne.s32.totalorder %s163, %s166
      %p175 = scmp.eq.s32.totalorder %s22, 1
      %p176 = por %p174, %p175
      %p177 = scmp.ne.s32.totalorder %s166, %s167
      %p178 = scmp.eq.s32.totalorder %s22, 0
      %p179 = por %p177, %p178
      %p180 = scmp.ne.s32.totalorder %s166, %s167
      %p181 = scmp.eq.s32.totalorder %s23, 1
      %p182 = por %p180, %p181
      %p184 = scmp.ne.s32.totalorder %s167, %s183
      %p185 = scmp.eq.s32.totalorder %s23, 0
      %p186 = por %p184, %p185
      %p187 = scmp.le.s32.totalorder 1, %s17
      %p188 = scmp.lt.s32.totalorder %s17, 3
      %p189 = pnand %p187, %p188
      %p190 = pneg %p189
      // Predicated region
      $region9: #{connect_net_v2_forward.3} parent=5 // pred_check
        _
      $region10: #{connect_net_v2_forward.3} parent=5 // pred_check_branch
        %192 = sbr.rel (%p189) target = $region12
      $region11: #{connect_net_v2_forward.3} parent=5 // pred_region
        %s193 = ssub.s32 %s17, 1
        // Predicated region
        $region13: #{connect_net_v2_forward.3} parent=11 // pred_check
          %p194 = pneg %p38
        $region14: #{connect_net_v2_forward.3} parent=11 // pred_check_branch
          %196 = sbr.rel (%p194) target = $region16
        $region15: #{connect_net_v2_forward.3} parent=11 // pred_region
          %198 = vsyncadd [#allocation5], 0
          %s200 = sshll.u32 %s0, 4
          %s201 = int_to_ptr.vmem [resolvable:$true] %s200
          %203 = dma.vmem_to_smem %s201, 16, [#allocation3], [#allocation5]
        $region16: #{connect_net_v2_forward.3} parent=11 // pred_fallthru
          _
        // Predicated region
        $region17: #{connect_net_v2_forward.3} parent=11 // pred_check
          %p204 = pneg %p59
        $region18: #{connect_net_v2_forward.3} parent=11 // pred_check_branch
          %206 = sbr.rel (%p204) target = $region20
        $region19: #{connect_net_v2_forward.3} parent=11 // pred_region
          %208 = vsyncadd [#allocation7], 0
          %s210 = sshll.u32 %s1, 4
          %s211 = int_to_ptr.vmem [resolvable:$true] %s210
          %213 = dma.vmem_to_smem %s211, 16, [#allocation6], [#allocation7]
        $region20: #{connect_net_v2_forward.3} parent=11 // pred_fallthru
          _
        // Predicated region
        $region21: #{connect_net_v2_forward.3} parent=11 // pred_check
          %p214 = pneg %p80
        $region22: #{connect_net_v2_forward.3} parent=11 // pred_check_branch
          %216 = sbr.rel (%p214) target = $region24
        $region23: #{connect_net_v2_forward.3} parent=11 // pred_region
          %218 = vsyncadd [#allocation7], 0
          %s220 = sshll.u32 %s2, 4
          %s221 = int_to_ptr.vmem [resolvable:$true] %s220
          %223 = dma.vmem_to_smem %s221, 16, [#allocation8], [#allocation7]
        $region24: #{connect_net_v2_forward.3} parent=11 // pred_fallthru
          _
        // Predicated region
        $region25: #{connect_net_v2_forward.3} parent=11 // pred_check
          %p224 = pneg %p101
        $region26: #{connect_net_v2_forward.3} parent=11 // pred_check_branch
          %226 = sbr.rel (%p224) target = $region28
        $region27: #{connect_net_v2_forward.3} parent=11 // pred_region
          _
        $region28: #{connect_net_v2_forward.3} parent=11 // pred_fallthru
          _
      $region12: #{connect_net_v2_forward.3} parent=5 // pred_fallthru
        _
      %p227 = scmp.lt.s32.totalorder %s17, 2
      // Predicated region
      $region29: #{connect_net_v2_forward.3} parent=5 // pred_check
        %p228 = pneg %p227
      $region30: #{connect_net_v2_forward.3} parent=5 // pred_check_branch
        %230 = sbr.rel (%p228) target = $region32
      $region31: #{connect_net_v2_forward.3} parent=5 // pred_region
        // Predicated region
        $region33: #{connect_net_v2_forward.3} parent=31 // pred_check
          %p231 = pneg %p121
        $region34: #{connect_net_v2_forward.3} parent=31 // pred_check_branch
          %233 = sbr.rel (%p231) target = $region36
        $region35: #{connect_net_v2_forward.3} parent=31 // pred_region
          %p234 = scmp.lt.s32.totalorder %s17, 1
          %s235 = scalar_select %p234, %s17, 1
          %s236 = smul.addr %s235, 4
          %s237 = smul.addr %s236, 8
          %s238 = scalar_lea.vmem %s4, %s237
        $region36: #{connect_net_v2_forward.3} parent=31 // pred_fallthru
          _
        // Predicated region
        $region37: #{connect_net_v2_forward.3} parent=31 // pred_check
          %p239 = pneg %p147
        $region38: #{connect_net_v2_forward.3} parent=31 // pred_check_branch
          %241 = sbr.rel (%p239) target = $region40
        $region39: #{connect_net_v2_forward.3} parent=31 // pred_region
          %p242 = scmp.lt.s32.totalorder %s17, 1
          %s243 = scalar_select %p242, %s17, 1
          %s244 = smul.addr %s243, 4
          %s245 = smul.addr %s244, 8
          %s246 = scalar_lea.vmem %s5, %s245
        $region40: #{connect_net_v2_forward.3} parent=31 // pred_fallthru
          _
      $region32: #{connect_net_v2_forward.3} parent=5 // pred_fallthru
        _
      %p247 = scmp.le.s32.totalorder 1, %s17
      %p248 = scmp.lt.s32.totalorder %s17, 3
      %p249 = pnand %p247, %p248
      %p250 = pneg %p249
      // Predicated region
      $region41: #{connect_net_v2_forward.3} parent=5 // pred_check
        _
      $region42: #{connect_net_v2_forward.3} parent=5 // pred_check_branch
        %252 = sbr.rel (%p249) target = $region44
      $region43: #{connect_net_v2_forward.3} parent=5 // pred_region
        %s253 = ssub.s32 %s17, 1
        // Predicated region
        $region45: #{connect_net_v2_forward.3} parent=43 // pred_check
          %p254 = pneg %p38
        $region46: #{connect_net_v2_forward.3} parent=43 // pred_check_branch
          %256 = sbr.rel (%p254) target = $region48
        $region47: #{connect_net_v2_forward.3} parent=43 // pred_region
          %258 = dma.done [#allocation5], 16
        $region48: #{connect_net_v2_forward.3} parent=43 // pred_fallthru
          _
        // Predicated region
        $region49: #{connect_net_v2_forward.3} parent=43 // pred_check
          %p259 = pneg %p59
        $region50: #{connect_net_v2_forward.3} parent=43 // pred_check_branch
          %261 = sbr.rel (%p259) target = $region52
        $region51: #{connect_net_v2_forward.3} parent=43 // pred_region
          %263 = dma.done [#allocation7], 16
        $region52: #{connect_net_v2_forward.3} parent=43 // pred_fallthru
          _
        // Predicated region
        $region53: #{connect_net_v2_forward.3} parent=43 // pred_check
          %p264 = pneg %p80
        $region54: #{connect_net_v2_forward.3} parent=43 // pred_check_branch
          %266 = sbr.rel (%p264) target = $region56
        $region55: #{connect_net_v2_forward.3} parent=43 // pred_region
          %268 = dma.done [#allocation7], 16
        $region56: #{connect_net_v2_forward.3} parent=43 // pred_fallthru
          _
        %269 = sfence
        %p270 = pneg %p38
        %p271 = pneg %p35
        %p272 = pneg %p59
        %p273 = pneg %p56
        %p274 = pneg %p80
        %p275 = pneg %p77
        %p276 = pneg %p101
        %p277 = pneg %p98
        %p278 = scmp.lt.s32.totalorder %s22, 1
        %s279 = scalar_select %p278, %s22, 1
        %s280 = smul.addr %s279, 4
        %s281 = smul.addr %s280, 8
        %s282 = scalar_lea.vmem %s4, %s281
        %p283 = pneg %p127
        %p284 = pneg %p124
        %p285 = scmp.lt.s32.totalorder %s22, 1
        %s286 = scalar_select %p285, %s22, 1
        %s287 = smul.addr %s286, 4
        %s288 = smul.addr %s287, 8
        %s289 = scalar_lea.vmem %s5, %s288
        %p290 = pneg %p153
        %p291 = pneg %p150
        %p292 = pneg %p179
        %p293 = pneg %p176
        %s294 = sand.u32 %s166, 1
        %s295 = scalar_lea.sflag [#allocation4], %s294
        %s296 = sand.u32 %s166, 1
        %s297 = smul.addr %s296, 64
        %s298 = scalar_lea.vmem [#allocation9], %s297
        %p299 = scmp.lt.s32.totalorder %s22, 1
        %s300 = scalar_select %p299, %s22, 1
        %s301 = smul.addr %s300, 4
        %s302 = smul.addr %s301, 8
        %s303 = scalar_lea.vmem %s4, %s302
        %p304 = scmp.lt.s32.totalorder %s22, 1
        %s305 = scalar_select %p304, %s22, 1
        %s306 = smul.addr %s305, 4
        %s307 = smul.addr %s306, 8
        %s308 = scalar_lea.vmem %s5, %s307
        %v310 = vld [vmem:[%s3] sm:$0x1]
        %v311 = vld [vmem:[%s3 + $0x1] sm:$0x1]
        %314 = vst [vmem:[#allocation1] ss:$9 sm:$0xff] %v310
        %s315 = scalar_lea.vmem [#allocation1], 1
        %316 = vst [vmem:[%s315] ss:$9 sm:$0xff] %v311
        %v317 = vld [vmem:[#allocation1] sm:$0xff]
        %vm319 = vcmask 1024
        %v320 = vsel %vm319, %v317, 0.0
        %v321 = vrot.slane %v320, 4
        %v322 = vadd.f32 %v320, %v321
        %v323 = vrot.slane %v322, 2
        %v324 = vadd.f32 %v322, %v323
        %v325 = vrot.slane %v324, 1
        %v326 = vadd.f32 %v324, %v325
        %v327 = vmul.f32 %v326, 0.5
        %v328 = vperm.slane %v327, 0
        %v330 = vrot.slane %v328, 1
        %v332 = vsub.f32 %v310, %v328
        %v333 = vsub.f32 %v311, %v330
        %v334 = vmul.f32 %v332, 2048.0
        %v335 = vmul.f32 %v333, 2048.0
        %v336 = vmul.f32 %v334, %v332
        %v337 = vmul.f32 %v335, %v333
        %340 = vrot.lane.b32.xlu0 %v336, 1
        %v341 = vpop.permute.xlu0 %340
        %342 = vrot.lane.b32.xlu0 %v337, 1
        %v343 = vpop.permute.xlu0 %342
        %v346 = vadd.f32 %v310, %v341
        %v347 = vadd.f32 %v311, %v343
        %350 = vst [vmem:[#allocation1] ss:$9 sm:$0xff] %v346
        %s351 = scalar_lea.vmem [#allocation1], 1
        %352 = vst [vmem:[%s351] ss:$9 sm:$0xff] %v347
        %v353 = vld [vmem:[#allocation1] sm:$0xff]
        %vm355 = vcmask 9224
        %v356 = vsel %vm355, %v353, 0.0
        %v357 = vrot.slane %v356, 4
        %v358 = vadd.f32 %v356, %v357
        %v359 = vrot.slane %v358, 2
        %v360 = vadd.f32 %v358, %v359
        %v361 = vrot.slane %v360, 1
        %v362 = vadd.f32 %v360, %v361
        %v363 = vmul.f32 %v362, 0.00024414063
        %v364 = vadd.f32 %v363, 1e-05
        %v365 = vrsqrt.pop %v364
        %v366 = vmul.f32 %v365, %v364
        %v367 = vmul.f32 %v366, %v365
        %v368 = vmul.f32 0.5, %v367
        %v369 = vsub.f32 1.5, %v368
        %v370 = vmul.f32 %v365, %v369
        %vm371 = vweird.f32 %v364
        %vm372 = vweird.f32 %v365
        %vm373 = vmor %vm371, %vm372
        %v374 = vsel %vm373, %v365, %v370
        %s375 = sld [smem:[#allocation3]]
        %v376 = vstv %s375
        %v377 = vmul.f32 %v374, %v376
        %s378 = sld [smem:[#allocation3 + $0x1]]
        %380 = vrot.lane.b32.xlu0 %v377, 127
        %v381 = vpop.permute.xlu0 %380
        %v383 = vmul.f32 %v327, %v381
        %v384 = vstv %s378
        %v385 = vsub.f32 %v384, %v383
        %v386 = vlaneseq
        %vm387 = vcmp.ge.s32.totalorder %v386, 127
        %vm388 = vcmp.lt.s32.totalorder %v386, 257
        %vm389 = vmand %vm387, %vm388
        %s390 = scalar_lea.vmem [#allocation2], 7
        %391 = vst.msk [vmem:[%s390] ss:$8 sm:$0x7] %vm389, 0.0
        %392 = vst.msk [vmem:[%s390] ss:$8 sm:$0x0] %vm389, 0.0
        %s393 = scalar_lea.vmem [#allocation2], 72
        %394 = vst.msk [vmem:[%s393] ss:$8 sm:$0x7] %vm389, 0.0
        %395 = vst.msk [vmem:[%s393] ss:$8 sm:$0x0] %vm389, 0.0
        %vm396 = vcmask 1048575
        %397 = vst.msk [vmem:[#allocation2] sm:$0x80] %vm396, 0.0
        %vm398 = vcmask 1048568
        %399 = vst.msk [vmem:[#allocation2 + $0x18] sm:$0xff] %vm398, 0.0
        %400 = vst.msk [vmem:[#allocation2 + $0x30] sm:$0xff] %vm398, 0.0
        %vm401 = vcmask 1041400
        %402 = vst.msk [vmem:[#allocation2 + $0x48] sm:$0x1] %vm401, 0.0
        %vm403 = vcmask 7175
        %404 = vst.msk [vmem:[#allocation2 + $0x10] sm:$0x80] %vm403, 0.0
        %vm405 = vcmask 7168
        %406 = vst.msk [vmem:[#allocation2 + $0x28] sm:$0xff] %vm405, 0.0
        %407 = vst.msk [vmem:[#allocation2 + $0x40] sm:$0xff] %vm405, 0.0
        %vm408 = vcmask 0
        %409 = vst.msk [vmem:[#allocation2 + $0x58] sm:$0x1] %vm408, 0.0
        %v410 = vld [vmem:[%s303] sm:$0xff]
        %v411 = vld [vmem:[%s303 + $0x8] sm:$0xff]
        %v412 = vld [vmem:[%s303 + $0x10] sm:$0xff]
        %v413 = vld [vmem:[%s303 + $0x18] sm:$0xff]
        %v414 = vpack.c.bf16 %v411, %v410
        %v415 = vpack.c.bf16 %v413, %v412
        %v416 = vld [vmem:[%s308] sm:$0xff]
        %v417 = vld [vmem:[%s308 + $0x8] sm:$0xff]
        %v418 = vld [vmem:[%s308 + $0x10] sm:$0xff]
        %v419 = vld [vmem:[%s308 + $0x18] sm:$0xff]
        %v420 = vpack.c.bf16 %v417, %v416
        %v421 = vpack.c.bf16 %v419, %v418
        %422 = vxpose.xlu0.c.b16.start [1/8] %v414, 128
        %423 = vxpose.xlu0.c.b16.cont [2/8] %v415, 128
        %424 = vxpose.xlu0.c.b16.cont [3/8] 0, 128
        %425 = vxpose.xlu0.c.b16.cont [4/8] 0, 128
        %426 = vxpose.xlu0.c.b16.cont [5/8] 0, 128
        %427 = vxpose.xlu0.c.b16.cont [6/8] 0, 128
        %428 = vxpose.xlu0.c.b16.cont [7/8] 0, 128
        %429 = vxpose.xlu0.c.b16.end [8/8] 0, 128
        %v430 = vpop.trf.xlu0
        %v431 = vpop.trf.xlu0
        %v432 = vpop.trf.xlu0
        %v433 = vpop.trf.xlu0
        %v434 = vpop.trf.xlu0
        %v435 = vpop.trf.xlu0
        %v436 = vpop.trf.xlu0
        %v437 = vpop.trf.xlu0
        %vm438 = vcmask 261120
        %v440 = vsel %vm438, %v430, 0
        %442 = vmatpush.bf16.msra.mxu0 0
        %443 = vmatpush.bf16.msra.mxu0 0
        %444 = vmatpush.bf16.msra.mxu0 0
        %445 = vmatpush.bf16.msra.mxu0 0
        %446 = vmatpush.bf16.msra.mxu0 0
        %447 = vmatpush.bf16.msra.mxu0 0
        %448 = vmatpush.bf16.msra.mxu0 %v421
        %449 = vmatpush.bf16.msra.mxu0 %v420
        %450 = vmatmul.bf16.gmra.mxu0 %v440
        %v451 = vpop.f32.mrf.mxu0
        %v452 = vadd.f32 0.0, %v451
        %v453 = vpop.f32.mrf.mxu0
        %v454 = vadd.f32 0.0, %v453
        %455 = vdwg.mxu0
        %s456 = vtos %v381
        %v457 = vstv %s456
        %v459 = vmul.f32 %v452, %v457
        %v460 = vmul.f32 %v454, %v457
        %s462 = vtos %v385
        %v463 = vstv %s462
        %v465 = vadd.f32 %v459, %v463
        %v466 = vadd.f32 %v460, %v463
        %467 = vst [vmem:[#allocation2 + $0x20] sm:$0xff] %v465
        %468 = vst [vmem:[#allocation2 + $0x38] sm:$0xff] %v466
        %v469 = vld [vmem:[#allocation2] sm:$0x80]
        %v470 = vld [vmem:[#allocation2 + $0x8] sm:$0x80]
        %v471 = vld [vmem:[#allocation2 + $0x18] sm:$0xff]
        %v472 = vld [vmem:[#allocation2 + $0x20] sm:$0xff]
        %v473 = vld [vmem:[#allocation2 + $0x30] sm:$0x7f]
        %v474 = vld [vmem:[#allocation2 + $0x38] sm:$0x7f]
        %s475 = sld [smem:[#allocation6]]
        %v476 = vstv %s475
        %v477 = vmul.f32 %v469, %v476
        %v478 = vmul.f32 %v470, %v476
        %v479 = vmul.f32 %v471, %v476
        %v480 = vmul.f32 %v472, %v476
        %v481 = vmul.f32 %v473, %v476
        %v482 = vmul.f32 %v474, %v476
        %s483 = sld [smem:[#allocation6 + $0x9]]
        %v484 = vstv %s483
        %v485 = vmul.f32 %v469, %v484
        %v486 = vmul.f32 %v470, %v484
        %v487 = vmul.f32 %v471, %v484
        %v488 = vmul.f32 %v472, %v484
        %v489 = vmul.f32 %v473, %v484
        %v490 = vmul.f32 %v474, %v484
        %s491 = sld [smem:[#allocation6 + $0x12]]
        %v492 = vstv %s491
        %v493 = vmul.f32 %v469, %v492
        %v494 = vmul.f32 %v470, %v492
        %v495 = vmul.f32 %v471, %v492
        %v496 = vmul.f32 %v472, %v492
        %v497 = vmul.f32 %v473, %v492
        %v498 = vmul.f32 %v474, %v492
        %s499 = sld [smem:[#allocation6 + $0x1b]]
        %v500 = vstv %s499
        %v501 = vmul.f32 %v469, %v500
        %v502 = vmul.f32 %v470, %v500
        %v503 = vmul.f32 %v471, %v500
        %v504 = vmul.f32 %v472, %v500
        %v505 = vmul.f32 %v473, %v500
        %v506 = vmul.f32 %v474, %v500
        %s507 = sld [smem:[#allocation6 + $0x1]]
        %v508 = vstv %s507
        %v509 = vmul.f32 %v470, %v508
        %v510 = vmul.f32 %v472, %v508
        %v511 = vmul.f32 %v474, %v508
        %515 = vrot.lane.b32.xlu0 %v509, 127
        %v516 = vpop.permute.xlu0 %515
        %517 = vrot.lane.b32.xlu0 %v510, 127
        %v518 = vpop.permute.xlu0 %517
        %519 = vrot.lane.b32.xlu0 %v511, 127
        %v520 = vpop.permute.xlu0 %519
        %v524 = vadd.f32 %v477, %v516
        %v525 = vadd.f32 %v478, %v516
        %v526 = vadd.f32 %v479, %v518
        %v527 = vadd.f32 %v480, %v518
        %v528 = vadd.f32 %v481, %v520
        %v529 = vadd.f32 %v482, %v520
        %s530 = sld [smem:[#allocation6 + $0xa]]
        %v531 = vstv %s530
        %v532 = vmul.f32 %v470, %v531
        %v533 = vmul.f32 %v472, %v531
        %v534 = vmul.f32 %v474, %v531
        %538 = vrot.lane.b32.xlu0 %v532, 127
        %v539 = vpop.permute.xlu0 %538
        %540 = vrot.lane.b32.xlu0 %v533, 127
        %v541 = vpop.permute.xlu0 %540
        %542 = vrot.lane.b32.xlu0 %v534, 127
        %v543 = vpop.permute.xlu0 %542
        %v547 = vadd.f32 %v485, %v539
        %v548 = vadd.f32 %v486, %v539
        %v549 = vadd.f32 %v487, %v541
        %v550 = vadd.f32 %v488, %v541
        %v551 = vadd.f32 %v489, %v543
        %v552 = vadd.f32 %v490, %v543
        %s553 = sld [smem:[#allocation6 + $0x13]]
        %v554 = vstv %s553
        %v555 = vmul.f32 %v470, %v554
        %v556 = vmul.f32 %v472, %v554
        %v557 = vmul.f32 %v474, %v554
        %561 = vrot.lane.b32.xlu0 %v555, 127
        %v562 = vpop.permute.xlu0 %561
        %563 = vrot.lane.b32.xlu0 %v556, 127
        %v564 = vpop.permute.xlu0 %563
        %565 = vrot.lane.b32.xlu0 %v557, 127
        %v566 = vpop.permute.xlu0 %565
        %v570 = vadd.f32 %v493, %v562
        %v571 = vadd.f32 %v494, %v562
        %v572 = vadd.f32 %v495, %v564
        %v573 = vadd.f32 %v496, %v564
        %v574 = vadd.f32 %v497, %v566
        %v575 = vadd.f32 %v498, %v566
        %s576 = sld [smem:[#allocation6 + $0x1c]]
        %v577 = vstv %s576
        %v578 = vmul.f32 %v470, %v577
        %v579 = vmul.f32 %v472, %v577
        %v580 = vmul.f32 %v474, %v577
        %584 = vrot.lane.b32.xlu0 %v578, 127
        %v585 = vpop.permute.xlu0 %584
        %586 = vrot.lane.b32.xlu0 %v579, 127
        %v587 = vpop.permute.xlu0 %586
        %588 = vrot.lane.b32.xlu0 %v580, 127
        %v589 = vpop.permute.xlu0 %588
        %v593 = vadd.f32 %v501, %v585
        %v594 = vadd.f32 %v502, %v585
        %v595 = vadd.f32 %v503, %v587
        %v596 = vadd.f32 %v504, %v587
        %v597 = vadd.f32 %v505, %v589
        %v598 = vadd.f32 %v506, %v589
        %v599 = vld [vmem:[#allocation2 + $0x8] sm:$0x80]
        %v600 = vld [vmem:[#allocation2 + $0x10] sm:$0x80]
        %v601 = vld [vmem:[#allocation2 + $0x20] sm:$0xff]
        %v602 = vld [vmem:[#allocation2 + $0x28] sm:$0xff]
        %v603 = vld [vmem:[#allocation2 + $0x38] sm:$0x7f]
        %v604 = vld [vmem:[#allocation2 + $0x40] sm:$0x7f]
        %s605 = sld [smem:[#allocation6 + $0x2]]
        %v606 = vstv %s605
        %v607 = vmul.f32 %v599, %v606
        %v608 = vmul.f32 %v600, %v606
        %v609 = vmul.f32 %v601, %v606
        %v610 = vmul.f32 %v602, %v606
        %v611 = vmul.f32 %v603, %v606
        %v612 = vmul.f32 %v604, %v606
        %619 = vrot.lane.b32.xlu0 %v607, 126
        %v620 = vpop.permute.xlu0 %619
        %621 = vrot.lane.b32.xlu0 %v608, 126
        %v622 = vpop.permute.xlu0 %621
        %623 = vrot.lane.b32.xlu0 %v609, 126
        %v624 = vpop.permute.xlu0 %623
        %625 = vrot.lane.b32.xlu0 %v610, 126
        %v626 = vpop.permute.xlu0 %625
        %627 = vrot.lane.b32.xlu0 %v611, 126
        %v628 = vpop.permute.xlu0 %627
        %629 = vrot.lane.b32.xlu0 %v612, 126
        %v630 = vpop.permute.xlu0 %629
        %vm631 = vcmask 1031168
        %v632 = vsel %vm631, %v620, %v622
        %v633 = vsel %vm631, %v624, %v626
        %v634 = vsel %vm631, %v628, %v630
        %v641 = vadd.f32 %v524, %v620
        %v642 = vadd.f32 %v525, %v632
        %v643 = vadd.f32 %v526, %v624
        %v644 = vadd.f32 %v527, %v633
        %v645 = vadd.f32 %v528, %v628
        %v646 = vadd.f32 %v529, %v634
        %s647 = sld [smem:[#allocation6 + $0xb]]
        %v648 = vstv %s647
        %v649 = vmul.f32 %v599, %v648
        %v650 = vmul.f32 %v600, %v648
        %v651 = vmul.f32 %v601, %v648
        %v652 = vmul.f32 %v602, %v648
        %v653 = vmul.f32 %v603, %v648
        %v654 = vmul.f32 %v604, %v648
        %661 = vrot.lane.b32.xlu0 %v649, 126
        %v662 = vpop.permute.xlu0 %661
        %663 = vrot.lane.b32.xlu0 %v650, 126
        %v664 = vpop.permute.xlu0 %663
        %665 = vrot.lane.b32.xlu0 %v651, 126
        %v666 = vpop.permute.xlu0 %665
        %667 = vrot.lane.b32.xlu0 %v652, 126
        %v668 = vpop.permute.xlu0 %667
        %669 = vrot.lane.b32.xlu0 %v653, 126
        %v670 = vpop.permute.xlu0 %669
        %671 = vrot.lane.b32.xlu0 %v654, 126
        %v672 = vpop.permute.xlu0 %671
        %v673 = vsel %vm631, %v662, %v664
        %v674 = vsel %vm631, %v666, %v668
        %v675 = vsel %vm631, %v670, %v672
        %v682 = vadd.f32 %v547, %v662
        %v683 = vadd.f32 %v548, %v673
        %v684 = vadd.f32 %v549, %v666
        %v685 = vadd.f32 %v550, %v674
        %v686 = vadd.f32 %v551, %v670
        %v687 = vadd.f32 %v552, %v675
        %s688 = sld [smem:[#allocation6 + $0x14]]
        %v689 = vstv %s688
        %v690 = vmul.f32 %v599, %v689
        %v691 = vmul.f32 %v600, %v689
        %v692 = vmul.f32 %v601, %v689
        %v693 = vmul.f32 %v602, %v689
        %v694 = vmul.f32 %v603, %v689
        %v695 = vmul.f32 %v604, %v689
        %702 = vrot.lane.b32.xlu0 %v690, 126
        %v703 = vpop.permute.xlu0 %702
        %704 = vrot.lane.b32.xlu0 %v691, 126
        %v705 = vpop.permute.xlu0 %704
        %706 = vrot.lane.b32.xlu0 %v692, 126
        %v707 = vpop.permute.xlu0 %706
        %708 = vrot.lane.b32.xlu0 %v693, 126
        %v709 = vpop.permute.xlu0 %708
        %710 = vrot.lane.b32.xlu0 %v694, 126
        %v711 = vpop.permute.xlu0 %710
        %712 = vrot.lane.b32.xlu0 %v695, 126
        %v713 = vpop.permute.xlu0 %712
        %v714 = vsel %vm631, %v703, %v705
        %v715 = vsel %vm631, %v707, %v709
        %v716 = vsel %vm631, %v711, %v713
        %v723 = vadd.f32 %v570, %v703
        %v724 = vadd.f32 %v571, %v714
        %v725 = vadd.f32 %v572, %v707
        %v726 = vadd.f32 %v573, %v715
        %v727 = vadd.f32 %v574, %v711
        %v728 = vadd.f32 %v575, %v716
        %s729 = sld [smem:[#allocation6 + $0x1d]]
        %v730 = vstv %s729
        %v731 = vmul.f32 %v599, %v730
        %v732 = vmul.f32 %v600, %v730
        %v733 = vmul.f32 %v601, %v730
        %v734 = vmul.f32 %v602, %v730
        %v735 = vmul.f32 %v603, %v730
        %v736 = vmul.f32 %v604, %v730
        %743 = vrot.lane.b32.xlu0 %v731, 126
        %v744 = vpop.permute.xlu0 %743
        %745 = vrot.lane.b32.xlu0 %v732, 126
        %v746 = vpop.permute.xlu0 %745
        %747 = vrot.lane.b32.xlu0 %v733, 126
        %v748 = vpop.permute.xlu0 %747
        %749 = vrot.lane.b32.xlu0 %v734, 126
        %v750 = vpop.permute.xlu0 %749
        %751 = vrot.lane.b32.xlu0 %v735, 126
        %v752 = vpop.permute.xlu0 %751
        %753 = vrot.lane.b32.xlu0 %v736, 126
        %v754 = vpop.permute.xlu0 %753
        %v755 = vsel %vm631, %v744, %v746
        %v756 = vsel %vm631, %v748, %v750
        %v757 = vsel %vm631, %v752, %v754
        %v764 = vadd.f32 %v593, %v744
        %v765 = vadd.f32 %v594, %v755
        %v766 = vadd.f32 %v595, %v748
        %v767 = vadd.f32 %v596, %v756
        %v768 = vadd.f32 %v597, %v752
        %v769 = vadd.f32 %v598, %v757
        %v770 = vld [vmem:[#allocation2 + $0x30] sm:$0xff]
        %v771 = vld [vmem:[#allocation2 + $0x38] sm:$0xff]
        %s772 = sld [smem:[#allocation6 + $0x3]]
        %v773 = vstv %s772
        %v774 = vmul.f32 %v471, %v773
        %v775 = vmul.f32 %v472, %v773
        %v776 = vmul.f32 %v770, %v773
        %v777 = vmul.f32 %v771, %v773
        %vm782 = vcmask 1046528
        %v783 = vrot.slane %v774, 1
        %v784 = vrot.slane %v775, 1
        %v785 = vrot.slane %v776, 1
        %v786 = vsel %vm782, %v783, %v785
        %v787 = vrot.slane %v777, 1
        %v788 = vsel %vm782, %v784, %v787
        %v795 = vadd.f32 %v641, %v783
        %v796 = vadd.f32 %v642, %v784
        %v797 = vadd.f32 %v643, %v786
        %v798 = vadd.f32 %v644, %v788
        %v799 = vadd.f32 %v645, %v785
        %v800 = vadd.f32 %v646, %v787
        %s801 = sld [smem:[#allocation6 + $0xc]]
        %v802 = vstv %s801
        %v803 = vmul.f32 %v471, %v802
        %v804 = vmul.f32 %v472, %v802
        %v805 = vmul.f32 %v770, %v802
        %v806 = vmul.f32 %v771, %v802
        %v811 = vrot.slane %v803, 1
        %v812 = vrot.slane %v804, 1
        %v813 = vrot.slane %v805, 1
        %v814 = vsel %vm782, %v811, %v813
        %v815 = vrot.slane %v806, 1
        %v816 = vsel %vm782, %v812, %v815
        %v823 = vadd.f32 %v682, %v811
        %v824 = vadd.f32 %v683, %v812
        %v825 = vadd.f32 %v684, %v814
        %v826 = vadd.f32 %v685, %v816
        %v827 = vadd.f32 %v686, %v813
        %v828 = vadd.f32 %v687, %v815
        %s829 = sld [smem:[#allocation6 + $0x15]]
        %v830 = vstv %s829
        %v831 = vmul.f32 %v471, %v830
        %v832 = vmul.f32 %v472, %v830
        %v833 = vmul.f32 %v770, %v830
        %v834 = vmul.f32 %v771, %v830
        %v839 = vrot.slane %v831, 1
        %v840 = vrot.slane %v832, 1
        %v841 = vrot.slane %v833, 1
        %v842 = vsel %vm782, %v839, %v841
        %v843 = vrot.slane %v834, 1
        %v844 = vsel %vm782, %v840, %v843
        %v851 = vadd.f32 %v723, %v839
        %v852 = vadd.f32 %v724, %v840
        %v853 = vadd.f32 %v725, %v842
        %v854 = vadd.f32 %v726, %v844
        %v855 = vadd.f32 %v727, %v841
        %v856 = vadd.f32 %v728, %v843
        %s857 = sld [smem:[#allocation6 + $0x1e]]
        %v858 = vstv %s857
        %v859 = vmul.f32 %v471, %v858
        %v860 = vmul.f32 %v472, %v858
        %v861 = vmul.f32 %v770, %v858
        %v862 = vmul.f32 %v771, %v858
        %v867 = vrot.slane %v859, 1
        %v868 = vrot.slane %v860, 1
        %v869 = vrot.slane %v861, 1
        %v870 = vsel %vm782, %v867, %v869
        %v871 = vrot.slane %v862, 1
        %v872 = vsel %vm782, %v868, %v871
        %v879 = vadd.f32 %v764, %v867
        %v880 = vadd.f32 %v765, %v868
        %v881 = vadd.f32 %v766, %v870
        %v882 = vadd.f32 %v767, %v872
        %v883 = vadd.f32 %v768, %v869
        %v884 = vadd.f32 %v769, %v871
        %s885 = sld [smem:[#allocation6 + $0x4]]
        %v886 = vstv %s885
        %v887 = vmul.f32 %v472, %v886
        %v888 = vmul.f32 %v771, %v886
        %v891 = vrot.slane %v887, 1
        %v892 = vrot.slane %v888, 1
        %v893 = vsel %vm782, %v891, %v892
        %894 = vrot.lane.b32.xlu0 %v891, 127
        %v895 = vpop.permute.xlu0 %894
        %896 = vrot.lane.b32.xlu0 %v893, 127
        %v897 = vpop.permute.xlu0 %896
        %898 = vrot.lane.b32.xlu0 %v892, 127
        %v899 = vpop.permute.xlu0 %898
        %v903 = vadd.f32 %v795, %v895
        %v904 = vadd.f32 %v796, %v895
        %v905 = vadd.f32 %v797, %v897
        %v906 = vadd.f32 %v798, %v897
        %v907 = vadd.f32 %v799, %v899
        %v908 = vadd.f32 %v800, %v899
        %s909 = sld [smem:[#allocation6 + $0xd]]
        %v910 = vstv %s909
        %v911 = vmul.f32 %v472, %v910
        %v912 = vmul.f32 %v771, %v910
        %v915 = vrot.slane %v911, 1
        %v916 = vrot.slane %v912, 1
        %v917 = vsel %vm782, %v915, %v916
        %918 = vrot.lane.b32.xlu0 %v915, 127
        %v919 = vpop.permute.xlu0 %918
        %920 = vrot.lane.b32.xlu0 %v917, 127
        %v921 = vpop.permute.xlu0 %920
        %922 = vrot.lane.b32.xlu0 %v916, 127
        %v923 = vpop.permute.xlu0 %922
        %v927 = vadd.f32 %v823, %v919
        %v928 = vadd.f32 %v824, %v919
        %v929 = vadd.f32 %v825, %v921
        %v930 = vadd.f32 %v826, %v921
        %v931 = vadd.f32 %v827, %v923
        %v932 = vadd.f32 %v828, %v923
        %s933 = sld [smem:[#allocation6 + $0x16]]
        %v934 = vstv %s933
        %v935 = vmul.f32 %v472, %v934
        %v936 = vmul.f32 %v771, %v934
        %v939 = vrot.slane %v935, 1
        %v940 = vrot.slane %v936, 1
        %v941 = vsel %vm782, %v939, %v940
        %942 = vrot.lane.b32.xlu0 %v939, 127
        %v943 = vpop.permute.xlu0 %942
        %944 = vrot.lane.b32.xlu0 %v941, 127
        %v945 = vpop.permute.xlu0 %944
        %946 = vrot.lane.b32.xlu0 %v940, 127
        %v947 = vpop.permute.xlu0 %946
        %v951 = vadd.f32 %v851, %v943
        %v952 = vadd.f32 %v852, %v943
        %v953 = vadd.f32 %v853, %v945
        %v954 = vadd.f32 %v854, %v945
        %v955 = vadd.f32 %v855, %v947
        %v956 = vadd.f32 %v856, %v947
        %s957 = sld [smem:[#allocation6 + $0x1f]]
        %v958 = vstv %s957
        %v959 = vmul.f32 %v472, %v958
        %v960 = vmul.f32 %v771, %v958
        %v963 = vrot.slane %v959, 1
        %v964 = vrot.slane %v960, 1
        %v965 = vsel %vm782, %v963, %v964
        %966 = vrot.lane.b32.xlu0 %v963, 127
        %v967 = vpop.permute.xlu0 %966
        %968 = vrot.lane.b32.xlu0 %v965, 127
        %v969 = vpop.permute.xlu0 %968
        %970 = vrot.lane.b32.xlu0 %v964, 127
        %v971 = vpop.permute.xlu0 %970
        %v975 = vadd.f32 %v879, %v967
        %v976 = vadd.f32 %v880, %v967
        %v977 = vadd.f32 %v881, %v969
        %v978 = vadd.f32 %v882, %v969
        %v979 = vadd.f32 %v883, %v971
        %v980 = vadd.f32 %v884, %v971
        %v981 = vld [vmem:[#allocation2 + $0x38] sm:$0xff]
        %v982 = vld [vmem:[#allocation2 + $0x40] sm:$0xff]
        %s983 = sld [smem:[#allocation6 + $0x5]]
        %v984 = vstv %s983
        %v985 = vmul.f32 %v601, %v984
        %v986 = vmul.f32 %v602, %v984
        %v987 = vmul.f32 %v981, %v984
        %v988 = vmul.f32 %v982, %v984
        %v993 = vrot.slane %v985, 1
        %v994 = vrot.slane %v986, 1
        %v995 = vrot.slane %v987, 1
        %v996 = vsel %vm782, %v993, %v995
        %v997 = vrot.slane %v988, 1
        %v998 = vsel %vm782, %v994, %v997
        %999 = vrot.lane.b32.xlu0 %v993, 126
        %v1000 = vpop.permute.xlu0 %999
        %1001 = vrot.lane.b32.xlu0 %v994, 126
        %v1002 = vpop.permute.xlu0 %1001
        %1003 = vrot.lane.b32.xlu0 %v996, 126
        %v1004 = vpop.permute.xlu0 %1003
        %1005 = vrot.lane.b32.xlu0 %v998, 126
        %v1006 = vpop.permute.xlu0 %1005
        %1007 = vrot.lane.b32.xlu0 %v995, 126
        %v1008 = vpop.permute.xlu0 %1007
        %1009 = vrot.lane.b32.xlu0 %v997, 126
        %v1010 = vpop.permute.xlu0 %1009
        %v1011 = vsel %vm631, %v1000, %v1002
        %v1012 = vsel %vm631, %v1004, %v1006
        %v1013 = vsel %vm631, %v1008, %v1010
        %v1020 = vadd.f32 %v903, %v1000
        %v1021 = vadd.f32 %v904, %v1011
        %v1022 = vadd.f32 %v905, %v1004
        %v1023 = vadd.f32 %v906, %v1012
        %v1024 = vadd.f32 %v907, %v1008
        %v1025 = vadd.f32 %v908, %v1013
        %s1026 = sld [smem:[#allocation6 + $0xe]]
        %v1027 = vstv %s1026
        %v1028 = vmul.f32 %v601, %v1027
        %v1029 = vmul.f32 %v602, %v1027
        %v1030 = vmul.f32 %v981, %v1027
        %v1031 = vmul.f32 %v982, %v1027
        %v1036 = vrot.slane %v1028, 1
        %v1037 = vrot.slane %v1029, 1
        %v1038 = vrot.slane %v1030, 1
        %v1039 = vsel %vm782, %v1036, %v1038
        %v1040 = vrot.slane %v1031, 1
        %v1041 = vsel %vm782, %v1037, %v1040
        %1042 = vrot.lane.b32.xlu0 %v1036, 126
        %v1043 = vpop.permute.xlu0 %1042
        %1044 = vrot.lane.b32.xlu0 %v1037, 126
        %v1045 = vpop.permute.xlu0 %1044
        %1046 = vrot.lane.b32.xlu0 %v1039, 126
        %v1047 = vpop.permute.xlu0 %1046
        %1048 = vrot.lane.b32.xlu0 %v1041, 126
        %v1049 = vpop.permute.xlu0 %1048
        %1050 = vrot.lane.b32.xlu0 %v1038, 126
        %v1051 = vpop.permute.xlu0 %1050
        %1052 = vrot.lane.b32.xlu0 %v1040, 126
        %v1053 = vpop.permute.xlu0 %1052
        %v1054 = vsel %vm631, %v1043, %v1045
        %v1055 = vsel %vm631, %v1047, %v1049
        %v1056 = vsel %vm631, %v1051, %v1053
        %v1063 = vadd.f32 %v927, %v1043
        %v1064 = vadd.f32 %v928, %v1054
        %v1065 = vadd.f32 %v929, %v1047
        %v1066 = vadd.f32 %v930, %v1055
        %v1067 = vadd.f32 %v931, %v1051
        %v1068 = vadd.f32 %v932, %v1056
        %s1069 = sld [smem:[#allocation6 + $0x17]]
        %v1070 = vstv %s1069
        %v1071 = vmul.f32 %v601, %v1070
        %v1072 = vmul.f32 %v602, %v1070
        %v1073 = vmul.f32 %v981, %v1070
        %v1074 = vmul.f32 %v982, %v1070
        %v1079 = vrot.slane %v1071, 1
        %v1080 = vrot.slane %v1072, 1
        %v1081 = vrot.slane %v1073, 1
        %v1082 = vsel %vm782, %v1079, %v1081
        %v1083 = vrot.slane %v1074, 1
        %v1084 = vsel %vm782, %v1080, %v1083
        %1085 = vrot.lane.b32.xlu0 %v1079, 126
        %v1086 = vpop.permute.xlu0 %1085
        %1087 = vrot.lane.b32.xlu0 %v1080, 126
        %v1088 = vpop.permute.xlu0 %1087
        %1089 = vrot.lane.b32.xlu0 %v1082, 126
        %v1090 = vpop.permute.xlu0 %1089
        %1091 = vrot.lane.b32.xlu0 %v1084, 126
        %v1092 = vpop.permute.xlu0 %1091
        %1093 = vrot.lane.b32.xlu0 %v1081, 126
        %v1094 = vpop.permute.xlu0 %1093
        %1095 = vrot.lane.b32.xlu0 %v1083, 126
        %v1096 = vpop.permute.xlu0 %1095
        %v1097 = vsel %vm631, %v1086, %v1088
        %v1098 = vsel %vm631, %v1090, %v1092
        %v1099 = vsel %vm631, %v1094, %v1096
        %v1106 = vadd.f32 %v951, %v1086
        %v1107 = vadd.f32 %v952, %v1097
        %v1108 = vadd.f32 %v953, %v1090
        %v1109 = vadd.f32 %v954, %v1098
        %v1110 = vadd.f32 %v955, %v1094
        %v1111 = vadd.f32 %v956, %v1099
        %s1112 = sld [smem:[#allocation6 + $0x20]]
        %v1113 = vstv %s1112
        %v1114 = vmul.f32 %v601, %v1113
        %v1115 = vmul.f32 %v602, %v1113
        %v1116 = vmul.f32 %v981, %v1113
        %v1117 = vmul.f32 %v982, %v1113
        %v1122 = vrot.slane %v1114, 1
        %v1123 = vrot.slane %v1115, 1
        %v1124 = vrot.slane %v1116, 1
        %v1125 = vsel %vm782, %v1122, %v1124
        %v1126 = vrot.slane %v1117, 1
        %v1127 = vsel %vm782, %v1123, %v1126
        %1128 = vrot.lane.b32.xlu0 %v1122, 126
        %v1129 = vpop.permute.xlu0 %1128
        %1130 = vrot.lane.b32.xlu0 %v1123, 126
        %v1131 = vpop.permute.xlu0 %1130
        %1132 = vrot.lane.b32.xlu0 %v1125, 126
        %v1133 = vpop.permute.xlu0 %1132
        %1134 = vrot.lane.b32.xlu0 %v1127, 126
        %v1135 = vpop.permute.xlu0 %1134
        %1136 = vrot.lane.b32.xlu0 %v1124, 126
        %v1137 = vpop.permute.xlu0 %1136
        %1138 = vrot.lane.b32.xlu0 %v1126, 126
        %v1139 = vpop.permute.xlu0 %1138
        %v1140 = vsel %vm631, %v1129, %v1131
        %v1141 = vsel %vm631, %v1133, %v1135
        %v1142 = vsel %vm631, %v1137, %v1139
        %v1149 = vadd.f32 %v975, %v1129
        %v1150 = vadd.f32 %v976, %v1140
        %v1151 = vadd.f32 %v977, %v1133
        %v1152 = vadd.f32 %v978, %v1141
        %v1153 = vadd.f32 %v979, %v1137
        %v1154 = vadd.f32 %v980, %v1142
        %v1155 = vld [vmem:[#allocation2 + $0x18] sm:$0xfe]
        %v1156 = vld [vmem:[#allocation2 + $0x20] sm:$0xfe]
        %v1157 = vld [vmem:[#allocation2 + $0x30] sm:$0xff]
        %v1158 = vld [vmem:[#allocation2 + $0x38] sm:$0xff]
        %v1159 = vld [vmem:[#allocation2 + $0x48] sm:$0x1]
        %v1160 = vld [vmem:[#allocation2 + $0x50] sm:$0x1]
        %s1161 = sld [smem:[#allocation6 + $0x6]]
        %v1162 = vstv %s1161
        %v1163 = vmul.f32 %v1155, %v1162
        %v1164 = vmul.f32 %v1156, %v1162
        %v1165 = vmul.f32 %v1157, %v1162
        %v1166 = vmul.f32 %v1158, %v1162
        %v1167 = vmul.f32 %v1159, %v1162
        %v1168 = vmul.f32 %v1160, %v1162
        %vm1175 = vcmask 1045504
        %v1176 = vrot.slane %v1163, 2
        %v1177 = vrot.slane %v1164, 2
        %v1178 = vrot.slane %v1165, 2
        %v1179 = vsel %vm1175, %v1176, %v1178
        %v1180 = vrot.slane %v1166, 2
        %v1181 = vsel %vm1175, %v1177, %v1180
        %v1182 = vrot.slane %v1167, 2
        %v1183 = vsel %vm1175, %v1178, %v1182
        %v1184 = vrot.slane %v1168, 2
        %v1185 = vsel %vm1175, %v1180, %v1184
        %v1192 = vadd.f32 %v1020, %v1176
        %v1193 = vadd.f32 %v1021, %v1177
        %v1194 = vadd.f32 %v1022, %v1179
        %v1195 = vadd.f32 %v1023, %v1181
        %v1196 = vadd.f32 %v1024, %v1183
        %v1197 = vadd.f32 %v1025, %v1185
        %s1198 = sld [smem:[#allocation6 + $0xf]]
        %v1199 = vstv %s1198
        %v1200 = vmul.f32 %v1155, %v1199
        %v1201 = vmul.f32 %v1156, %v1199
        %v1202 = vmul.f32 %v1157, %v1199
        %v1203 = vmul.f32 %v1158, %v1199
        %v1204 = vmul.f32 %v1159, %v1199
        %v1205 = vmul.f32 %v1160, %v1199
        %v1212 = vrot.slane %v1200, 2
        %v1213 = vrot.slane %v1201, 2
        %v1214 = vrot.slane %v1202, 2
        %v1215 = vsel %vm1175, %v1212, %v1214
        %v1216 = vrot.slane %v1203, 2
        %v1217 = vsel %vm1175, %v1213, %v1216
        %v1218 = vrot.slane %v1204, 2
        %v1219 = vsel %vm1175, %v1214, %v1218
        %v1220 = vrot.slane %v1205, 2
        %v1221 = vsel %vm1175, %v1216, %v1220
        %v1228 = vadd.f32 %v1063, %v1212
        %v1229 = vadd.f32 %v1064, %v1213
        %v1230 = vadd.f32 %v1065, %v1215
        %v1231 = vadd.f32 %v1066, %v1217
        %v1232 = vadd.f32 %v1067, %v1219
        %v1233 = vadd.f32 %v1068, %v1221
        %s1234 = sld [smem:[#allocation6 + $0x18]]
        %v1235 = vstv %s1234
        %v1236 = vmul.f32 %v1155, %v1235
        %v1237 = vmul.f32 %v1156, %v1235
        %v1238 = vmul.f32 %v1157, %v1235
        %v1239 = vmul.f32 %v1158, %v1235
        %v1240 = vmul.f32 %v1159, %v1235
        %v1241 = vmul.f32 %v1160, %v1235
        %v1248 = vrot.slane %v1236, 2
        %v1249 = vrot.slane %v1237, 2
        %v1250 = vrot.slane %v1238, 2
        %v1251 = vsel %vm1175, %v1248, %v1250
        %v1252 = vrot.slane %v1239, 2
        %v1253 = vsel %vm1175, %v1249, %v1252
        %v1254 = vrot.slane %v1240, 2
        %v1255 = vsel %vm1175, %v1250, %v1254
        %v1256 = vrot.slane %v1241, 2
        %v1257 = vsel %vm1175, %v1252, %v1256
        %v1264 = vadd.f32 %v1106, %v1248
        %v1265 = vadd.f32 %v1107, %v1249
        %v1266 = vadd.f32 %v1108, %v1251
        %v1267 = vadd.f32 %v1109, %v1253
        %v1268 = vadd.f32 %v1110, %v1255
        %v1269 = vadd.f32 %v1111, %v1257
        %s1270 = sld [smem:[#allocation6 + $0x21]]
        %v1271 = vstv %s1270
        %v1272 = vmul.f32 %v1155, %v1271
        %v1273 = vmul.f32 %v1156, %v1271
        %v1274 = vmul.f32 %v1157, %v1271
        %v1275 = vmul.f32 %v1158, %v1271
        %v1276 = vmul.f32 %v1159, %v1271
        %v1277 = vmul.f32 %v1160, %v1271
        %v1284 = vrot.slane %v1272, 2
        %v1285 = vrot.slane %v1273, 2
        %v1286 = vrot.slane %v1274, 2
        %v1287 = vsel %vm1175, %v1284, %v1286
        %v1288 = vrot.slane %v1275, 2
        %v1289 = vsel %vm1175, %v1285, %v1288
        %v1290 = vrot.slane %v1276, 2
        %v1291 = vsel %vm1175, %v1286, %v1290
        %v1292 = vrot.slane %v1277, 2
        %v1293 = vsel %vm1175, %v1288, %v1292
        %v1300 = vadd.f32 %v1149, %v1284
        %v1301 = vadd.f32 %v1150, %v1285
        %v1302 = vadd.f32 %v1151, %v1287
        %v1303 = vadd.f32 %v1152, %v1289
        %v1304 = vadd.f32 %v1153, %v1291
        %v1305 = vadd.f32 %v1154, %v1293
        %s1306 = sld [smem:[#allocation6 + $0x7]]
        %v1307 = vstv %s1306
        %v1308 = vmul.f32 %v1156, %v1307
        %v1309 = vmul.f32 %v1158, %v1307
        %v1310 = vmul.f32 %v1160, %v1307
        %v1314 = vrot.slane %v1308, 2
        %v1315 = vrot.slane %v1309, 2
        %v1316 = vsel %vm1175, %v1314, %v1315
        %v1317 = vrot.slane %v1310, 2
        %v1318 = vsel %vm1175, %v1315, %v1317
        %1319 = vrot.lane.b32.xlu0 %v1314, 127
        %v1320 = vpop.permute.xlu0 %1319
        %1321 = vrot.lane.b32.xlu0 %v1316, 127
        %v1322 = vpop.permute.xlu0 %1321
        %1323 = vrot.lane.b32.xlu0 %v1318, 127
        %v1324 = vpop.permute.xlu0 %1323
        %v1328 = vadd.f32 %v1192, %v1320
        %v1329 = vadd.f32 %v1193, %v1320
        %v1330 = vadd.f32 %v1194, %v1322
        %v1331 = vadd.f32 %v1195, %v1322
        %v1332 = vadd.f32 %v1196, %v1324
        %v1333 = vadd.f32 %v1197, %v1324
        %s1334 = sld [smem:[#allocation6 + $0x10]]
        %v1335 = vstv %s1334
        %v1336 = vmul.f32 %v1156, %v1335
        %v1337 = vmul.f32 %v1158, %v1335
        %v1338 = vmul.f32 %v1160, %v1335
        %v1342 = vrot.slane %v1336, 2
        %v1343 = vrot.slane %v1337, 2
        %v1344 = vsel %vm1175, %v1342, %v1343
        %v1345 = vrot.slane %v1338, 2
        %v1346 = vsel %vm1175, %v1343, %v1345
        %1347 = vrot.lane.b32.xlu0 %v1342, 127
        %v1348 = vpop.permute.xlu0 %1347
        %1349 = vrot.lane.b32.xlu0 %v1344, 127
        %v1350 = vpop.permute.xlu0 %1349
        %1351 = vrot.lane.b32.xlu0 %v1346, 127
        %v1352 = vpop.permute.xlu0 %1351
        %v1356 = vadd.f32 %v1228, %v1348
        %v1357 = vadd.f32 %v1229, %v1348
        %v1358 = vadd.f32 %v1230, %v1350
        %v1359 = vadd.f32 %v1231, %v1350
        %v1360 = vadd.f32 %v1232, %v1352
        %v1361 = vadd.f32 %v1233, %v1352
        %s1362 = sld [smem:[#allocation6 + $0x19]]
        %v1363 = vstv %s1362
        %v1364 = vmul.f32 %v1156, %v1363
        %v1365 = vmul.f32 %v1158, %v1363
        %v1366 = vmul.f32 %v1160, %v1363
        %v1370 = vrot.slane %v1364, 2
        %v1371 = vrot.slane %v1365, 2
        %v1372 = vsel %vm1175, %v1370, %v1371
        %v1373 = vrot.slane %v1366, 2
        %v1374 = vsel %vm1175, %v1371, %v1373
        %1375 = vrot.lane.b32.xlu0 %v1370, 127
        %v1376 = vpop.permute.xlu0 %1375
        %1377 = vrot.lane.b32.xlu0 %v1372, 127
        %v1378 = vpop.permute.xlu0 %1377
        %1379 = vrot.lane.b32.xlu0 %v1374, 127
        %v1380 = vpop.permute.xlu0 %1379
        %v1384 = vadd.f32 %v1264, %v1376
        %v1385 = vadd.f32 %v1265, %v1376
        %v1386 = vadd.f32 %v1266, %v1378
        %v1387 = vadd.f32 %v1267, %v1378
        %v1388 = vadd.f32 %v1268, %v1380
        %v1389 = vadd.f32 %v1269, %v1380
        %s1390 = sld [smem:[#allocation6 + $0x22]]
        %v1391 = vstv %s1390
        %v1392 = vmul.f32 %v1156, %v1391
        %v1393 = vmul.f32 %v1158, %v1391
        %v1394 = vmul.f32 %v1160, %v1391
        %v1398 = vrot.slane %v1392, 2
        %v1399 = vrot.slane %v1393, 2
        %v1400 = vsel %vm1175, %v1398, %v1399
        %v1401 = vrot.slane %v1394, 2
        %v1402 = vsel %vm1175, %v1399, %v1401
        %1403 = vrot.lane.b32.xlu0 %v1398, 127
        %v1404 = vpop.permute.xlu0 %1403
        %1405 = vrot.lane.b32.xlu0 %v1400, 127
        %v1406 = vpop.permute.xlu0 %1405
        %1407 = vrot.lane.b32.xlu0 %v1402, 127
        %v1408 = vpop.permute.xlu0 %1407
        %v1412 = vadd.f32 %v1300, %v1404
        %v1413 = vadd.f32 %v1301, %v1404
        %v1414 = vadd.f32 %v1302, %v1406
        %v1415 = vadd.f32 %v1303, %v1406
        %v1416 = vadd.f32 %v1304, %v1408
        %v1417 = vadd.f32 %v1305, %v1408
        %v1418 = vld [vmem:[#allocation2 + $0x20] sm:$0xfe]
        %v1419 = vld [vmem:[#allocation2 + $0x28] sm:$0xfe]
        %v1420 = vld [vmem:[#allocation2 + $0x38] sm:$0xff]
        %v1421 = vld [vmem:[#allocation2 + $0x40] sm:$0xff]
        %v1422 = vld [vmem:[#allocation2 + $0x50] sm:$0x1]
        %v1423 = vld [vmem:[#allocation2 + $0x58] sm:$0x1]
        %s1424 = sld [smem:[#allocation6 + $0x8]]
        %v1425 = vstv %s1424
        %v1426 = vmul.f32 %v1418, %v1425
        %v1427 = vmul.f32 %v1419, %v1425
        %v1428 = vmul.f32 %v1420, %v1425
        %v1429 = vmul.f32 %v1421, %v1425
        %v1430 = vmul.f32 %v1422, %v1425
        %v1431 = vmul.f32 %v1423, %v1425
        %v1438 = vrot.slane %v1426, 2
        %v1439 = vrot.slane %v1427, 2
        %v1440 = vrot.slane %v1428, 2
        %v1441 = vsel %vm1175, %v1438, %v1440
        %v1442 = vrot.slane %v1429, 2
        %v1443 = vsel %vm1175, %v1439, %v1442
        %v1444 = vrot.slane %v1430, 2
        %v1445 = vsel %vm1175, %v1440, %v1444
        %v1446 = vrot.slane %v1431, 2
        %v1447 = vsel %vm1175, %v1442, %v1446
        %1448 = vrot.lane.b32.xlu0 %v1438, 126
        %v1449 = vpop.permute.xlu0 %1448
        %1450 = vrot.lane.b32.xlu0 %v1439, 126
        %v1451 = vpop.permute.xlu0 %1450
        %1452 = vrot.lane.b32.xlu0 %v1441, 126
        %v1453 = vpop.permute.xlu0 %1452
        %1454 = vrot.lane.b32.xlu0 %v1443, 126
        %v1455 = vpop.permute.xlu0 %1454
        %1456 = vrot.lane.b32.xlu0 %v1445, 126
        %v1457 = vpop.permute.xlu0 %1456
        %1458 = vrot.lane.b32.xlu0 %v1447, 126
        %v1459 = vpop.permute.xlu0 %1458
        %v1460 = vsel %vm631, %v1449, %v1451
        %v1461 = vsel %vm631, %v1453, %v1455
        %v1462 = vsel %vm631, %v1457, %v1459
        %v1469 = vadd.f32 %v1328, %v1449
        %v1470 = vadd.f32 %v1329, %v1460
        %v1471 = vadd.f32 %v1330, %v1453
        %v1472 = vadd.f32 %v1331, %v1461
        %v1473 = vadd.f32 %v1332, %v1457
        %v1474 = vadd.f32 %v1333, %v1462
        %s1475 = sld [smem:[#allocation6 + $0x11]]
        %v1476 = vstv %s1475
        %v1477 = vmul.f32 %v1418, %v1476
        %v1478 = vmul.f32 %v1419, %v1476
        %v1479 = vmul.f32 %v1420, %v1476
        %v1480 = vmul.f32 %v1421, %v1476
        %v1481 = vmul.f32 %v1422, %v1476
        %v1482 = vmul.f32 %v1423, %v1476
        %v1489 = vrot.slane %v1477, 2
        %v1490 = vrot.slane %v1478, 2
        %v1491 = vrot.slane %v1479, 2
        %v1492 = vsel %vm1175, %v1489, %v1491
        %v1493 = vrot.slane %v1480, 2
        %v1494 = vsel %vm1175, %v1490, %v1493
        %v1495 = vrot.slane %v1481, 2
        %v1496 = vsel %vm1175, %v1491, %v1495
        %v1497 = vrot.slane %v1482, 2
        %v1498 = vsel %vm1175, %v1493, %v1497
        %1499 = vrot.lane.b32.xlu0 %v1489, 126
        %v1500 = vpop.permute.xlu0 %1499
        %1501 = vrot.lane.b32.xlu0 %v1490, 126
        %v1502 = vpop.permute.xlu0 %1501
        %1503 = vrot.lane.b32.xlu0 %v1492, 126
        %v1504 = vpop.permute.xlu0 %1503
        %1505 = vrot.lane.b32.xlu0 %v1494, 126
        %v1506 = vpop.permute.xlu0 %1505
        %1507 = vrot.lane.b32.xlu0 %v1496, 126
        %v1508 = vpop.permute.xlu0 %1507
        %1509 = vrot.lane.b32.xlu0 %v1498, 126
        %v1510 = vpop.permute.xlu0 %1509
        %v1511 = vsel %vm631, %v1500, %v1502
        %v1512 = vsel %vm631, %v1504, %v1506
        %v1513 = vsel %vm631, %v1508, %v1510
        %v1520 = vadd.f32 %v1356, %v1500
        %v1521 = vadd.f32 %v1357, %v1511
        %v1522 = vadd.f32 %v1358, %v1504
        %v1523 = vadd.f32 %v1359, %v1512
        %v1524 = vadd.f32 %v1360, %v1508
        %v1525 = vadd.f32 %v1361, %v1513
        %s1526 = sld [smem:[#allocation6 + $0x1a]]
        %v1527 = vstv %s1526
        %v1528 = vmul.f32 %v1418, %v1527
        %v1529 = vmul.f32 %v1419, %v1527
        %v1530 = vmul.f32 %v1420, %v1527
        %v1531 = vmul.f32 %v1421, %v1527
        %v1532 = vmul.f32 %v1422, %v1527
        %v1533 = vmul.f32 %v1423, %v1527
        %v1540 = vrot.slane %v1528, 2
        %v1541 = vrot.slane %v1529, 2
        %v1542 = vrot.slane %v1530, 2
        %v1543 = vsel %vm1175, %v1540, %v1542
        %v1544 = vrot.slane %v1531, 2
        %v1545 = vsel %vm1175, %v1541, %v1544
        %v1546 = vrot.slane %v1532, 2
        %v1547 = vsel %vm1175, %v1542, %v1546
        %v1548 = vrot.slane %v1533, 2
        %v1549 = vsel %vm1175, %v1544, %v1548
        %1550 = vrot.lane.b32.xlu0 %v1540, 126
        %v1551 = vpop.permute.xlu0 %1550
        %1552 = vrot.lane.b32.xlu0 %v1541, 126
        %v1553 = vpop.permute.xlu0 %1552
        %1554 = vrot.lane.b32.xlu0 %v1543, 126
        %v1555 = vpop.permute.xlu0 %1554
        %1556 = vrot.lane.b32.xlu0 %v1545, 126
        %v1557 = vpop.permute.xlu0 %1556
        %1558 = vrot.lane.b32.xlu0 %v1547, 126
        %v1559 = vpop.permute.xlu0 %1558
        %1560 = vrot.lane.b32.xlu0 %v1549, 126
        %v1561 = vpop.permute.xlu0 %1560
        %v1562 = vsel %vm631, %v1551, %v1553
        %v1563 = vsel %vm631, %v1555, %v1557
        %v1564 = vsel %vm631, %v1559, %v1561
        %v1571 = vadd.f32 %v1384, %v1551
        %v1572 = vadd.f32 %v1385, %v1562
        %v1573 = vadd.f32 %v1386, %v1555
        %v1574 = vadd.f32 %v1387, %v1563
        %v1575 = vadd.f32 %v1388, %v1559
        %v1576 = vadd.f32 %v1389, %v1564
        %s1577 = sld [smem:[#allocation6 + $0x23]]
        %v1578 = vstv %s1577
        %v1579 = vmul.f32 %v1418, %v1578
        %v1580 = vmul.f32 %v1419, %v1578
        %v1581 = vmul.f32 %v1420, %v1578
        %v1582 = vmul.f32 %v1421, %v1578
        %v1583 = vmul.f32 %v1422, %v1578
        %v1584 = vmul.f32 %v1423, %v1578
        %v1591 = vrot.slane %v1579, 2
        %v1592 = vrot.slane %v1580, 2
        %v1593 = vrot.slane %v1581, 2
        %v1594 = vsel %vm1175, %v1591, %v1593
        %v1595 = vrot.slane %v1582, 2
        %v1596 = vsel %vm1175, %v1592, %v1595
        %v1597 = vrot.slane %v1583, 2
        %v1598 = vsel %vm1175, %v1593, %v1597
        %v1599 = vrot.slane %v1584, 2
        %v1600 = vsel %vm1175, %v1595, %v1599
        %1601 = vrot.lane.b32.xlu0 %v1591, 126
        %v1602 = vpop.permute.xlu0 %1601
        %1603 = vrot.lane.b32.xlu0 %v1592, 126
        %v1604 = vpop.permute.xlu0 %1603
        %1605 = vrot.lane.b32.xlu0 %v1594, 126
        %v1606 = vpop.permute.xlu0 %1605
        %1607 = vrot.lane.b32.xlu0 %v1596, 126
        %v1608 = vpop.permute.xlu0 %1607
        %1609 = vrot.lane.b32.xlu0 %v1598, 126
        %v1610 = vpop.permute.xlu0 %1609
        %1611 = vrot.lane.b32.xlu0 %v1600, 126
        %v1612 = vpop.permute.xlu0 %1611
        %v1613 = vsel %vm631, %v1602, %v1604
        %v1614 = vsel %vm631, %v1606, %v1608
        %v1615 = vsel %vm631, %v1610, %v1612
        %v1622 = vadd.f32 %v1412, %v1602
        %v1623 = vadd.f32 %v1413, %v1613
        %v1624 = vadd.f32 %v1414, %v1606
        %v1625 = vadd.f32 %v1415, %v1614
        %v1626 = vadd.f32 %v1416, %v1610
        %v1627 = vadd.f32 %v1417, %v1615
        %s1628 = sld [smem:[#allocation8]]
        %v1629 = vstv %s1628
        %v1630 = vadd.f32 %v1469, %v1629
        %v1631 = vadd.f32 %v1470, %v1629
        %v1632 = vadd.f32 %v1471, %v1629
        %v1633 = vadd.f32 %v1472, %v1629
        %v1634 = vadd.f32 %v1473, %v1629
        %v1635 = vadd.f32 %v1474, %v1629
        %v1636 = vxor.u32 %v1630, 2147483648
        %v1637 = vxor.u32 %v1631, 2147483648
        %v1638 = vxor.u32 %v1632, 2147483648
        %v1639 = vxor.u32 %v1633, 2147483648
        %v1640 = vxor.u32 %v1634, 2147483648
        %v1641 = vxor.u32 %v1635, 2147483648
        %v1642 = vmul.f32 %v1636, 1.442695
        %v1643 = vpow.pop %v1642
        %v1644 = vmul.f32 %v1637, 1.442695
        %v1645 = vpow.pop %v1644
        %v1646 = vmul.f32 %v1638, 1.442695
        %v1647 = vpow.pop %v1646
        %v1648 = vmul.f32 %v1639, 1.442695
        %v1649 = vpow.pop %v1648
        %v1650 = vmul.f32 %v1640, 1.442695
        %v1651 = vpow.pop %v1650
        %v1652 = vmul.f32 %v1641, 1.442695
        %v1653 = vpow.pop %v1652
        %v1654 = vadd.f32 %v1643, 1.0
        %v1655 = vadd.f32 %v1645, 1.0
        %v1656 = vadd.f32 %v1647, 1.0
        %v1657 = vadd.f32 %v1649, 1.0
        %v1658 = vadd.f32 %v1651, 1.0
        %v1659 = vadd.f32 %v1653, 1.0
        %v1660 = vrcp.pop %v1654
        %v1661 = vmul.f32 %v1654, %v1660
        %v1662 = vsub.f32 1.0, %v1661
        %v1663 = vmul.f32 %v1660, %v1662
        %v1664 = vadd.f32 %v1660, %v1663
        %vm1665 = vweird.f32 %v1654
        %vm1666 = vweird.f32 %v1660
        %vm1667 = vmor %vm1665, %vm1666
        %v1668 = vsel %vm1667, %v1660, %v1664
        %v1669 = vand.u32 2147483647, %v1654
        %vm1670 = vcmp.eq.f32.partialorder %v1669, 8.507059e+37
        %v1671 = vand.u32 %v1654, 2147483648
        %v1672 = vor.u32 1.1754944e-38, %v1671
        %v1673 = vsel %vm1670, %v1672, %v1668
        %v1674 = vmul.f32 1.0, %v1673
        %v1675 = vrcp.pop %v1655
        %v1676 = vmul.f32 %v1655, %v1675
        %v1677 = vsub.f32 1.0, %v1676
        %v1678 = vmul.f32 %v1675, %v1677
        %v1679 = vadd.f32 %v1675, %v1678
        %vm1680 = vweird.f32 %v1655
        %vm1681 = vweird.f32 %v1675
        %vm1682 = vmor %vm1680, %vm1681
        %v1683 = vsel %vm1682, %v1675, %v1679
        %v1684 = vand.u32 2147483647, %v1655
        %vm1685 = vcmp.eq.f32.partialorder %v1684, 8.507059e+37
        %v1686 = vand.u32 %v1655, 2147483648
        %v1687 = vor.u32 1.1754944e-38, %v1686
        %v1688 = vsel %vm1685, %v1687, %v1683
        %v1689 = vmul.f32 1.0, %v1688
        %v1690 = vrcp.pop %v1656
        %v1691 = vmul.f32 %v1656, %v1690
        %v1692 = vsub.f32 1.0, %v1691
        %v1693 = vmul.f32 %v1690, %v1692
        %v1694 = vadd.f32 %v1690, %v1693
        %vm1695 = vweird.f32 %v1656
        %vm1696 = vweird.f32 %v1690
        %vm1697 = vmor %vm1695, %vm1696
        %v1698 = vsel %vm1697, %v1690, %v1694
        %v1699 = vand.u32 2147483647, %v1656
        %vm1700 = vcmp.eq.f32.partialorder %v1699, 8.507059e+37
        %v1701 = vand.u32 %v1656, 2147483648
        %v1702 = vor.u32 1.1754944e-38, %v1701
        %v1703 = vsel %vm1700, %v1702, %v1698
        %v1704 = vmul.f32 1.0, %v1703
        %v1705 = vrcp.pop %v1657
        %v1706 = vmul.f32 %v1657, %v1705
        %v1707 = vsub.f32 1.0, %v1706
        %v1708 = vmul.f32 %v1705, %v1707
        %v1709 = vadd.f32 %v1705, %v1708
        %vm1710 = vweird.f32 %v1657
        %vm1711 = vweird.f32 %v1705
        %vm1712 = vmor %vm1710, %vm1711
        %v1713 = vsel %vm1712, %v1705, %v1709
        %v1714 = vand.u32 2147483647, %v1657
        %vm1715 = vcmp.eq.f32.partialorder %v1714, 8.507059e+37
        %v1716 = vand.u32 %v1657, 2147483648
        %v1717 = vor.u32 1.1754944e-38, %v1716
        %v1718 = vsel %vm1715, %v1717, %v1713
        %v1719 = vmul.f32 1.0, %v1718
        %v1720 = vrcp.pop %v1658
        %v1721 = vmul.f32 %v1658, %v1720
        %v1722 = vsub.f32 1.0, %v1721
        %v1723 = vmul.f32 %v1720, %v1722
        %v1724 = vadd.f32 %v1720, %v1723
        %vm1725 = vweird.f32 %v1658
        %vm1726 = vweird.f32 %v1720
        %vm1727 = vmor %vm1725, %vm1726
        %v1728 = vsel %vm1727, %v1720, %v1724
        %v1729 = vand.u32 2147483647, %v1658
        %vm1730 = vcmp.eq.f32.partialorder %v1729, 8.507059e+37
        %v1731 = vand.u32 %v1658, 2147483648
        %v1732 = vor.u32 1.1754944e-38, %v1731
        %v1733 = vsel %vm1730, %v1732, %v1728
        %v1734 = vmul.f32 1.0, %v1733
        %v1735 = vrcp.pop %v1659
        %v1736 = vmul.f32 %v1659, %v1735
        %v1737 = vsub.f32 1.0, %v1736
        %v1738 = vmul.f32 %v1735, %v1737
        %v1739 = vadd.f32 %v1735, %v1738
        %vm1740 = vweird.f32 %v1659
        %vm1741 = vweird.f32 %v1735
        %vm1742 = vmor %vm1740, %vm1741
        %v1743 = vsel %vm1742, %v1735, %v1739
        %v1744 = vand.u32 2147483647, %v1659
        %vm1745 = vcmp.eq.f32.partialorder %v1744, 8.507059e+37
        %v1746 = vand.u32 %v1659, 2147483648
        %v1747 = vor.u32 1.1754944e-38, %v1746
        %v1748 = vsel %vm1745, %v1747, %v1743
        %v1749 = vmul.f32 1.0, %v1748
        %1756 = vrot.lane.b32.xlu0 %v1674, 1
        %v1757 = vpop.permute.xlu0 %1756
        %1758 = vrot.lane.b32.xlu0 %v1689, 1
        %v1759 = vpop.permute.xlu0 %1758
        %1760 = vrot.lane.b32.xlu0 %v1704, 1
        %v1761 = vpop.permute.xlu0 %1760
        %1762 = vrot.lane.b32.xlu0 %v1719, 1
        %v1763 = vpop.permute.xlu0 %1762
        %1764 = vrot.lane.b32.xlu0 %v1734, 1
        %v1765 = vpop.permute.xlu0 %1764
        %1766 = vrot.lane.b32.xlu0 %v1749, 1
        %v1767 = vpop.permute.xlu0 %1766
        %v1768 = vsel %vm405, %v1757, %v1759
        %v1769 = vsel %vm405, %v1761, %v1763
        %v1770 = vsel %vm405, %v1765, %v1767
        %1774 = vst [vmem:[%s298 - $0x7] sm:$0x80] %v1768
        %1775 = vst [vmem:[%s298 + $0x1] sm:$0xff] %v1769
        %1776 = vst [vmem:[%s298 + $0x9] sm:$0x7f] %v1770
        %s1777 = sld [smem:[#allocation8 + $0x1]]
        %v1778 = vstv %s1777
        %v1779 = vadd.f32 %v1520, %v1778
        %v1780 = vadd.f32 %v1521, %v1778
        %v1781 = vadd.f32 %v1522, %v1778
        %v1782 = vadd.f32 %v1523, %v1778
        %v1783 = vadd.f32 %v1524, %v1778
        %v1784 = vadd.f32 %v1525, %v1778
        %v1785 = vxor.u32 %v1779, 2147483648
        %v1786 = vxor.u32 %v1780, 2147483648
        %v1787 = vxor.u32 %v1781, 2147483648
        %v1788 = vxor.u32 %v1782, 2147483648
        %v1789 = vxor.u32 %v1783, 2147483648
        %v1790 = vxor.u32 %v1784, 2147483648
        %v1791 = vmul.f32 %v1785, 1.442695
        %v1792 = vpow.pop %v1791
        %v1793 = vmul.f32 %v1786, 1.442695
        %v1794 = vpow.pop %v1793
        %v1795 = vmul.f32 %v1787, 1.442695
        %v1796 = vpow.pop %v1795
        %v1797 = vmul.f32 %v1788, 1.442695
        %v1798 = vpow.pop %v1797
        %v1799 = vmul.f32 %v1789, 1.442695
        %v1800 = vpow.pop %v1799
        %v1801 = vmul.f32 %v1790, 1.442695
        %v1802 = vpow.pop %v1801
        %v1803 = vadd.f32 %v1792, 1.0
        %v1804 = vadd.f32 %v1794, 1.0
        %v1805 = vadd.f32 %v1796, 1.0
        %v1806 = vadd.f32 %v1798, 1.0
        %v1807 = vadd.f32 %v1800, 1.0
        %v1808 = vadd.f32 %v1802, 1.0
        %v1809 = vrcp.pop %v1803
        %v1810 = vmul.f32 %v1803, %v1809
        %v1811 = vsub.f32 1.0, %v1810
        %v1812 = vmul.f32 %v1809, %v1811
        %v1813 = vadd.f32 %v1809, %v1812
        %vm1814 = vweird.f32 %v1803
        %vm1815 = vweird.f32 %v1809
        %vm1816 = vmor %vm1814, %vm1815
        %v1817 = vsel %vm1816, %v1809, %v1813
        %v1818 = vand.u32 2147483647, %v1803
        %vm1819 = vcmp.eq.f32.partialorder %v1818, 8.507059e+37
        %v1820 = vand.u32 %v1803, 2147483648
        %v1821 = vor.u32 1.1754944e-38, %v1820
        %v1822 = vsel %vm1819, %v1821, %v1817
        %v1823 = vmul.f32 1.0, %v1822
        %v1824 = vrcp.pop %v1804
        %v1825 = vmul.f32 %v1804, %v1824
        %v1826 = vsub.f32 1.0, %v1825
        %v1827 = vmul.f32 %v1824, %v1826
        %v1828 = vadd.f32 %v1824, %v1827
        %vm1829 = vweird.f32 %v1804
        %vm1830 = vweird.f32 %v1824
        %vm1831 = vmor %vm1829, %vm1830
        %v1832 = vsel %vm1831, %v1824, %v1828
        %v1833 = vand.u32 2147483647, %v1804
        %vm1834 = vcmp.eq.f32.partialorder %v1833, 8.507059e+37
        %v1835 = vand.u32 %v1804, 2147483648
        %v1836 = vor.u32 1.1754944e-38, %v1835
        %v1837 = vsel %vm1834, %v1836, %v1832
        %v1838 = vmul.f32 1.0, %v1837
        %v1839 = vrcp.pop %v1805
        %v1840 = vmul.f32 %v1805, %v1839
        %v1841 = vsub.f32 1.0, %v1840
        %v1842 = vmul.f32 %v1839, %v1841
        %v1843 = vadd.f32 %v1839, %v1842
        %vm1844 = vweird.f32 %v1805
        %vm1845 = vweird.f32 %v1839
        %vm1846 = vmor %vm1844, %vm1845
        %v1847 = vsel %vm1846, %v1839, %v1843
        %v1848 = vand.u32 2147483647, %v1805
        %vm1849 = vcmp.eq.f32.partialorder %v1848, 8.507059e+37
        %v1850 = vand.u32 %v1805, 2147483648
        %v1851 = vor.u32 1.1754944e-38, %v1850
        %v1852 = vsel %vm1849, %v1851, %v1847
        %v1853 = vmul.f32 1.0, %v1852
        %v1854 = vrcp.pop %v1806
        %v1855 = vmul.f32 %v1806, %v1854
        %v1856 = vsub.f32 1.0, %v1855
        %v1857 = vmul.f32 %v1854, %v1856
        %v1858 = vadd.f32 %v1854, %v1857
        %vm1859 = vweird.f32 %v1806
        %vm1860 = vweird.f32 %v1854
        %vm1861 = vmor %vm1859, %vm1860
        %v1862 = vsel %vm1861, %v1854, %v1858
        %v1863 = vand.u32 2147483647, %v1806
        %vm1864 = vcmp.eq.f32.partialorder %v1863, 8.507059e+37
        %v1865 = vand.u32 %v1806, 2147483648
        %v1866 = vor.u32 1.1754944e-38, %v1865
        %v1867 = vsel %vm1864, %v1866, %v1862
        %v1868 = vmul.f32 1.0, %v1867
        %v1869 = vrcp.pop %v1807
        %v1870 = vmul.f32 %v1807, %v1869
        %v1871 = vsub.f32 1.0, %v1870
        %v1872 = vmul.f32 %v1869, %v1871
        %v1873 = vadd.f32 %v1869, %v1872
        %vm1874 = vweird.f32 %v1807
        %vm1875 = vweird.f32 %v1869
        %vm1876 = vmor %vm1874, %vm1875
        %v1877 = vsel %vm1876, %v1869, %v1873
        %v1878 = vand.u32 2147483647, %v1807
        %vm1879 = vcmp.eq.f32.partialorder %v1878, 8.507059e+37
        %v1880 = vand.u32 %v1807, 2147483648
        %v1881 = vor.u32 1.1754944e-38, %v1880
        %v1882 = vsel %vm1879, %v1881, %v1877
        %v1883 = vmul.f32 1.0, %v1882
        %v1884 = vrcp.pop %v1808
        %v1885 = vmul.f32 %v1808, %v1884
        %v1886 = vsub.f32 1.0, %v1885
        %v1887 = vmul.f32 %v1884, %v1886
        %v1888 = vadd.f32 %v1884, %v1887
        %vm1889 = vweird.f32 %v1808
        %vm1890 = vweird.f32 %v1884
        %vm1891 = vmor %vm1889, %vm1890
        %v1892 = vsel %vm1891, %v1884, %v1888
        %v1893 = vand.u32 2147483647, %v1808
        %vm1894 = vcmp.eq.f32.partialorder %v1893, 8.507059e+37
        %v1895 = vand.u32 %v1808, 2147483648
        %v1896 = vor.u32 1.1754944e-38, %v1895
        %v1897 = vsel %vm1894, %v1896, %v1892
        %v1898 = vmul.f32 1.0, %v1897
        %1905 = vrot.lane.b32.xlu0 %v1823, 1
        %v1906 = vpop.permute.xlu0 %1905
        %1907 = vrot.lane.b32.xlu0 %v1838, 1
        %v1908 = vpop.permute.xlu0 %1907
        %1909 = vrot.lane.b32.xlu0 %v1853, 1
        %v1910 = vpop.permute.xlu0 %1909
        %1911 = vrot.lane.b32.xlu0 %v1868, 1
        %v1912 = vpop.permute.xlu0 %1911
        %1913 = vrot.lane.b32.xlu0 %v1883, 1
        %v1914 = vpop.permute.xlu0 %1913
        %1915 = vrot.lane.b32.xlu0 %v1898, 1
        %v1916 = vpop.permute.xlu0 %1915
        %v1917 = vsel %vm405, %v1906, %v1908
        %v1918 = vsel %vm405, %v1910, %v1912
        %v1919 = vsel %vm405, %v1914, %v1916
        %s1923 = scalar_lea.vmem %s298, 16 [#allocation9]
        %1924 = vst [vmem:[%s1923 - $0x7] sm:$0x80] %v1917
        %1925 = vst [vmem:[%s1923 + $0x1] sm:$0xff] %v1918
        %1926 = vst [vmem:[%s1923 + $0x9] sm:$0x7f] %v1919
        %s1927 = sld [smem:[#allocation8 + $0x2]]
        %v1928 = vstv %s1927
        %v1929 = vadd.f32 %v1571, %v1928
        %v1930 = vadd.f32 %v1572, %v1928
        %v1931 = vadd.f32 %v1573, %v1928
        %v1932 = vadd.f32 %v1574, %v1928
        %v1933 = vadd.f32 %v1575, %v1928
        %v1934 = vadd.f32 %v1576, %v1928
        %v1935 = vxor.u32 %v1929, 2147483648
        %v1936 = vxor.u32 %v1930, 2147483648
        %v1937 = vxor.u32 %v1931, 2147483648
        %v1938 = vxor.u32 %v1932, 2147483648
        %v1939 = vxor.u32 %v1933, 2147483648
        %v1940 = vxor.u32 %v1934, 2147483648
        %v1941 = vmul.f32 %v1935, 1.442695
        %v1942 = vpow.pop %v1941
        %v1943 = vmul.f32 %v1936, 1.442695
        %v1944 = vpow.pop %v1943
        %v1945 = vmul.f32 %v1937, 1.442695
        %v1946 = vpow.pop %v1945
        %v1947 = vmul.f32 %v1938, 1.442695
        %v1948 = vpow.pop %v1947
        %v1949 = vmul.f32 %v1939, 1.442695
        %v1950 = vpow.pop %v1949
        %v1951 = vmul.f32 %v1940, 1.442695
        %v1952 = vpow.pop %v1951
        %v1953 = vadd.f32 %v1942, 1.0
        %v1954 = vadd.f32 %v1944, 1.0
        %v1955 = vadd.f32 %v1946, 1.0
        %v1956 = vadd.f32 %v1948, 1.0
        %v1957 = vadd.f32 %v1950, 1.0
        %v1958 = vadd.f32 %v1952, 1.0
        %v1959 = vrcp.pop %v1953
        %v1960 = vmul.f32 %v1953, %v1959
        %v1961 = vsub.f32 1.0, %v1960
        %v1962 = vmul.f32 %v1959, %v1961
        %v1963 = vadd.f32 %v1959, %v1962
        %vm1964 = vweird.f32 %v1953
        %vm1965 = vweird.f32 %v1959
        %vm1966 = vmor %vm1964, %vm1965
        %v1967 = vsel %vm1966, %v1959, %v1963
        %v1968 = vand.u32 2147483647, %v1953
        %vm1969 = vcmp.eq.f32.partialorder %v1968, 8.507059e+37
        %v1970 = vand.u32 %v1953, 2147483648
        %v1971 = vor.u32 1.1754944e-38, %v1970
        %v1972 = vsel %vm1969, %v1971, %v1967
        %v1973 = vmul.f32 1.0, %v1972
        %v1974 = vrcp.pop %v1954
        %v1975 = vmul.f32 %v1954, %v1974
        %v1976 = vsub.f32 1.0, %v1975
        %v1977 = vmul.f32 %v1974, %v1976
        %v1978 = vadd.f32 %v1974, %v1977
        %vm1979 = vweird.f32 %v1954
        %vm1980 = vweird.f32 %v1974
        %vm1981 = vmor %vm1979, %vm1980
        %v1982 = vsel %vm1981, %v1974, %v1978
        %v1983 = vand.u32 2147483647, %v1954
        %vm1984 = vcmp.eq.f32.partialorder %v1983, 8.507059e+37
        %v1985 = vand.u32 %v1954, 2147483648
        %v1986 = vor.u32 1.1754944e-38, %v1985
        %v1987 = vsel %vm1984, %v1986, %v1982
        %v1988 = vmul.f32 1.0, %v1987
        %v1989 = vrcp.pop %v1955
        %v1990 = vmul.f32 %v1955, %v1989
        %v1991 = vsub.f32 1.0, %v1990
        %v1992 = vmul.f32 %v1989, %v1991
        %v1993 = vadd.f32 %v1989, %v1992
        %vm1994 = vweird.f32 %v1955
        %vm1995 = vweird.f32 %v1989
        %vm1996 = vmor %vm1994, %vm1995
        %v1997 = vsel %vm1996, %v1989, %v1993
        %v1998 = vand.u32 2147483647, %v1955
        %vm1999 = vcmp.eq.f32.partialorder %v1998, 8.507059e+37
        %v2000 = vand.u32 %v1955, 2147483648
        %v2001 = vor.u32 1.1754944e-38, %v2000
        %v2002 = vsel %vm1999, %v2001, %v1997
        %v2003 = vmul.f32 1.0, %v2002
        %v2004 = vrcp.pop %v1956
        %v2005 = vmul.f32 %v1956, %v2004
        %v2006 = vsub.f32 1.0, %v2005
        %v2007 = vmul.f32 %v2004, %v2006
        %v2008 = vadd.f32 %v2004, %v2007
        %vm2009 = vweird.f32 %v1956
        %vm2010 = vweird.f32 %v2004
        %vm2011 = vmor %vm2009, %vm2010
        %v2012 = vsel %vm2011, %v2004, %v2008
        %v2013 = vand.u32 2147483647, %v1956
        %vm2014 = vcmp.eq.f32.partialorder %v2013, 8.507059e+37
        %v2015 = vand.u32 %v1956, 2147483648
        %v2016 = vor.u32 1.1754944e-38, %v2015
        %v2017 = vsel %vm2014, %v2016, %v2012
        %v2018 = vmul.f32 1.0, %v2017
        %v2019 = vrcp.pop %v1957
        %v2020 = vmul.f32 %v1957, %v2019
        %v2021 = vsub.f32 1.0, %v2020
        %v2022 = vmul.f32 %v2019, %v2021
        %v2023 = vadd.f32 %v2019, %v2022
        %vm2024 = vweird.f32 %v1957
        %vm2025 = vweird.f32 %v2019
        %vm2026 = vmor %vm2024, %vm2025
        %v2027 = vsel %vm2026, %v2019, %v2023
        %v2028 = vand.u32 2147483647, %v1957
        %vm2029 = vcmp.eq.f32.partialorder %v2028, 8.507059e+37
        %v2030 = vand.u32 %v1957, 2147483648
        %v2031 = vor.u32 1.1754944e-38, %v2030
        %v2032 = vsel %vm2029, %v2031, %v2027
        %v2033 = vmul.f32 1.0, %v2032
        %v2034 = vrcp.pop %v1958
        %v2035 = vmul.f32 %v1958, %v2034
        %v2036 = vsub.f32 1.0, %v2035
        %v2037 = vmul.f32 %v2034, %v2036
        %v2038 = vadd.f32 %v2034, %v2037
        %vm2039 = vweird.f32 %v1958
        %vm2040 = vweird.f32 %v2034
        %vm2041 = vmor %vm2039, %vm2040
        %v2042 = vsel %vm2041, %v2034, %v2038
        %v2043 = vand.u32 2147483647, %v1958
        %vm2044 = vcmp.eq.f32.partialorder %v2043, 8.507059e+37
        %v2045 = vand.u32 %v1958, 2147483648
        %v2046 = vor.u32 1.1754944e-38, %v2045
        %v2047 = vsel %vm2044, %v2046, %v2042
        %v2048 = vmul.f32 1.0, %v2047
        %2055 = vrot.lane.b32.xlu0 %v1973, 1
        %v2056 = vpop.permute.xlu0 %2055
        %2057 = vrot.lane.b32.xlu0 %v1988, 1
        %v2058 = vpop.permute.xlu0 %2057
        %2059 = vrot.lane.b32.xlu0 %v2003, 1
        %v2060 = vpop.permute.xlu0 %2059
        %2061 = vrot.lane.b32.xlu0 %v2018, 1
        %v2062 = vpop.permute.xlu0 %2061
        %2063 = vrot.lane.b32.xlu0 %v2033, 1
        %v2064 = vpop.permute.xlu0 %2063
        %2065 = vrot.lane.b32.xlu0 %v2048, 1
        %v2066 = vpop.permute.xlu0 %2065
        %v2067 = vsel %vm405, %v2056, %v2058
        %v2068 = vsel %vm405, %v2060, %v2062
        %v2069 = vsel %vm405, %v2064, %v2066
        %s2073 = scalar_lea.vmem %s298, 32 [#allocation9]
        %2074 = vst [vmem:[%s2073 - $0x7] sm:$0x80] %v2067
        %2075 = vst [vmem:[%s2073 + $0x1] sm:$0xff] %v2068
        %2076 = vst [vmem:[%s2073 + $0x9] sm:$0x7f] %v2069
        %s2077 = sld [smem:[#allocation8 + $0x3]]
        %v2078 = vstv %s2077
        %v2079 = vadd.f32 %v1622, %v2078
        %v2080 = vadd.f32 %v1623, %v2078
        %v2081 = vadd.f32 %v1624, %v2078
        %v2082 = vadd.f32 %v1625, %v2078
        %v2083 = vadd.f32 %v1626, %v2078
        %v2084 = vadd.f32 %v1627, %v2078
        %v2085 = vxor.u32 %v2079, 2147483648
        %v2086 = vxor.u32 %v2080, 2147483648
        %v2087 = vxor.u32 %v2081, 2147483648
        %v2088 = vxor.u32 %v2082, 2147483648
        %v2089 = vxor.u32 %v2083, 2147483648
        %v2090 = vxor.u32 %v2084, 2147483648
        %v2091 = vmul.f32 %v2085, 1.442695
        %v2092 = vpow.pop %v2091
        %v2093 = vmul.f32 %v2086, 1.442695
        %v2094 = vpow.pop %v2093
        %v2095 = vmul.f32 %v2087, 1.442695
        %v2096 = vpow.pop %v2095
        %v2097 = vmul.f32 %v2088, 1.442695
        %v2098 = vpow.pop %v2097
        %v2099 = vmul.f32 %v2089, 1.442695
        %v2100 = vpow.pop %v2099
        %v2101 = vmul.f32 %v2090, 1.442695
        %v2102 = vpow.pop %v2101
        %v2103 = vadd.f32 %v2092, 1.0
        %v2104 = vadd.f32 %v2094, 1.0
        %v2105 = vadd.f32 %v2096, 1.0
        %v2106 = vadd.f32 %v2098, 1.0
        %v2107 = vadd.f32 %v2100, 1.0
        %v2108 = vadd.f32 %v2102, 1.0
        %v2109 = vrcp.pop %v2103
        %v2110 = vmul.f32 %v2103, %v2109
        %v2111 = vsub.f32 1.0, %v2110
        %v2112 = vmul.f32 %v2109, %v2111
        %v2113 = vadd.f32 %v2109, %v2112
        %vm2114 = vweird.f32 %v2103
        %vm2115 = vweird.f32 %v2109
        %vm2116 = vmor %vm2114, %vm2115
        %v2117 = vsel %vm2116, %v2109, %v2113
        %v2118 = vand.u32 2147483647, %v2103
        %vm2119 = vcmp.eq.f32.partialorder %v2118, 8.507059e+37
        %v2120 = vand.u32 %v2103, 2147483648
        %v2121 = vor.u32 1.1754944e-38, %v2120
        %v2122 = vsel %vm2119, %v2121, %v2117
        %v2123 = vmul.f32 1.0, %v2122
        %v2124 = vrcp.pop %v2104
        %v2125 = vmul.f32 %v2104, %v2124
        %v2126 = vsub.f32 1.0, %v2125
        %v2127 = vmul.f32 %v2124, %v2126
        %v2128 = vadd.f32 %v2124, %v2127
        %vm2129 = vweird.f32 %v2104
        %vm2130 = vweird.f32 %v2124
        %vm2131 = vmor %vm2129, %vm2130
        %v2132 = vsel %vm2131, %v2124, %v2128
        %v2133 = vand.u32 2147483647, %v2104
        %vm2134 = vcmp.eq.f32.partialorder %v2133, 8.507059e+37
        %v2135 = vand.u32 %v2104, 2147483648
        %v2136 = vor.u32 1.1754944e-38, %v2135
        %v2137 = vsel %vm2134, %v2136, %v2132
        %v2138 = vmul.f32 1.0, %v2137
        %v2139 = vrcp.pop %v2105
        %v2140 = vmul.f32 %v2105, %v2139
        %v2141 = vsub.f32 1.0, %v2140
        %v2142 = vmul.f32 %v2139, %v2141
        %v2143 = vadd.f32 %v2139, %v2142
        %vm2144 = vweird.f32 %v2105
        %vm2145 = vweird.f32 %v2139
        %vm2146 = vmor %vm2144, %vm2145
        %v2147 = vsel %vm2146, %v2139, %v2143
        %v2148 = vand.u32 2147483647, %v2105
        %vm2149 = vcmp.eq.f32.partialorder %v2148, 8.507059e+37
        %v2150 = vand.u32 %v2105, 2147483648
        %v2151 = vor.u32 1.1754944e-38, %v2150
        %v2152 = vsel %vm2149, %v2151, %v2147
        %v2153 = vmul.f32 1.0, %v2152
        %v2154 = vrcp.pop %v2106
        %v2155 = vmul.f32 %v2106, %v2154
        %v2156 = vsub.f32 1.0, %v2155
        %v2157 = vmul.f32 %v2154, %v2156
        %v2158 = vadd.f32 %v2154, %v2157
        %vm2159 = vweird.f32 %v2106
        %vm2160 = vweird.f32 %v2154
        %vm2161 = vmor %vm2159, %vm2160
        %v2162 = vsel %vm2161, %v2154, %v2158
        %v2163 = vand.u32 2147483647, %v2106
        %vm2164 = vcmp.eq.f32.partialorder %v2163, 8.507059e+37
        %v2165 = vand.u32 %v2106, 2147483648
        %v2166 = vor.u32 1.1754944e-38, %v2165
        %v2167 = vsel %vm2164, %v2166, %v2162
        %v2168 = vmul.f32 1.0, %v2167
        %v2169 = vrcp.pop %v2107
        %v2170 = vmul.f32 %v2107, %v2169
        %v2171 = vsub.f32 1.0, %v2170
        %v2172 = vmul.f32 %v2169, %v2171
        %v2173 = vadd.f32 %v2169, %v2172
        %vm2174 = vweird.f32 %v2107
        %vm2175 = vweird.f32 %v2169
        %vm2176 = vmor %vm2174, %vm2175
        %v2177 = vsel %vm2176, %v2169, %v2173
        %v2178 = vand.u32 2147483647, %v2107
        %vm2179 = vcmp.eq.f32.partialorder %v2178, 8.507059e+37
        %v2180 = vand.u32 %v2107, 2147483648
        %v2181 = vor.u32 1.1754944e-38, %v2180
        %v2182 = vsel %vm2179, %v2181, %v2177
        %v2183 = vmul.f32 1.0, %v2182
        %v2184 = vrcp.pop %v2108
        %v2185 = vmul.f32 %v2108, %v2184
        %v2186 = vsub.f32 1.0, %v2185
        %v2187 = vmul.f32 %v2184, %v2186
        %v2188 = vadd.f32 %v2184, %v2187
        %vm2189 = vweird.f32 %v2108
        %vm2190 = vweird.f32 %v2184
        %vm2191 = vmor %vm2189, %vm2190
        %v2192 = vsel %vm2191, %v2184, %v2188
        %v2193 = vand.u32 2147483647, %v2108
        %vm2194 = vcmp.eq.f32.partialorder %v2193, 8.507059e+37
        %v2195 = vand.u32 %v2108, 2147483648
        %v2196 = vor.u32 1.1754944e-38, %v2195
        %v2197 = vsel %vm2194, %v2196, %v2192
        %v2198 = vmul.f32 1.0, %v2197
        %2205 = vrot.lane.b32.xlu0 %v2123, 1
        %v2206 = vpop.permute.xlu0 %2205
        %2207 = vrot.lane.b32.xlu0 %v2138, 1
        %v2208 = vpop.permute.xlu0 %2207
        %2209 = vrot.lane.b32.xlu0 %v2153, 1
        %v2210 = vpop.permute.xlu0 %2209
        %2211 = vrot.lane.b32.xlu0 %v2168, 1
        %v2212 = vpop.permute.xlu0 %2211
        %2213 = vrot.lane.b32.xlu0 %v2183, 1
        %v2214 = vpop.permute.xlu0 %2213
        %2215 = vrot.lane.b32.xlu0 %v2198, 1
        %v2216 = vpop.permute.xlu0 %2215
        %v2217 = vsel %vm405, %v2206, %v2208
        %v2218 = vsel %vm405, %v2210, %v2212
        %v2219 = vsel %vm405, %v2214, %v2216
        %s2223 = scalar_lea.vmem %s298, 48 [#allocation9]
        %2224 = vst [vmem:[%s2223 - $0x7] sm:$0x80] %v2217
        %2225 = vst [vmem:[%s2223 + $0x1] sm:$0xff] %v2218
        %2226 = vst [vmem:[%s2223 + $0x9] sm:$0x7f] %v2219
        %s2227 = sand.u32 %s166, 1
        %s2228 = scalar_lea.sflag [#allocation4], %s2227
        %s2229 = sand.u32 %s166, 1
        %s2230 = smul.addr %s2229, 64
        %s2231 = scalar_lea.vmem [#allocation9], %s2230
        // Predicated region
        $region57: #{connect_net_v2_forward.3} parent=43 // pred_check
          %p2232 = pneg %p176
        $region58: #{connect_net_v2_forward.3} parent=43 // pred_check_branch
          %2234 = sbr.rel (%p2232) target = $region60
        $region59: #{connect_net_v2_forward.3} parent=43 // pred_region
          %2236 = vsyncadd %s2228, 0
          %s2237 = smul.addr %s22, 8
          %s2238 = smul.addr %s2237, 8
          %s2239 = scalar_lea.hbm %s6, %s2238
          %s2240 = sshll.u32 %s2231, 4
          %s2241 = int_to_ptr.vmem [resolvable:$true] %s2240
          %s2242 = sshll.u32 %s2239, 4
          %s2243 = int_to_ptr.hbm [resolvable:$true] %s2242
          %2248 = dma.vmem_to_hbm [thread:$0]  %s2241, 1024, %s2243, %s2228, 128, 128, 8
        $region60: #{connect_net_v2_forward.3} parent=43 // pred_fallthru
          _
      $region44: #{connect_net_v2_forward.3} parent=5 // pred_fallthru
        _
      %p2249 = scmp.le.s32.totalorder 2, %s17
      // Predicated region
      $region61: #{connect_net_v2_forward.3} parent=5 // pred_check
        %p2250 = pneg %p2249
      $region62: #{connect_net_v2_forward.3} parent=5 // pred_check_branch
        %2252 = sbr.rel (%p2250) target = $region64
      $region63: #{connect_net_v2_forward.3} parent=5 // pred_region
        %s2253 = ssub.s32 %s17, 2
        // Predicated region
        $region65: #{connect_net_v2_forward.3} parent=63 // pred_check
          %p2254 = pneg %p182
        $region66: #{connect_net_v2_forward.3} parent=63 // pred_check_branch
          %2256 = sbr.rel (%p2254) target = $region68
        $region67: #{connect_net_v2_forward.3} parent=63 // pred_region
          %s2257 = sand.u32 %s167, 1
          %s2258 = scalar_lea.sflag [#allocation4], %s2257
          %s2259 = sand.u32 %s167, 1
          %s2260 = smul.addr %s2259, 64
          %s2261 = scalar_lea.vmem [#allocation9], %s2260
          %2263 = dma.done %s2258, 1024
        $region68: #{connect_net_v2_forward.3} parent=63 // pred_fallthru
          _
      $region64: #{connect_net_v2_forward.3} parent=5 // pred_fallthru
        _
    $region6: #{connect_net_v2_forward.3} parent=1 // loop_footer
      %s21 = sadd.s32 1, %s17
    $region7: #{connect_net_v2_forward.3} parent=1 // loop_footer_branch
      %16 = sbr.rel target = $region3
    $region8: #{connect_net_v2_forward.3} parent=1 // loop_exit
      _
    %2264 = vsyncpa [#allocation4], 1
    %s2265 = scalar_lea.sflag [#allocation4], 1
    %2266 = vsyncpa %s2265, 1
    %2267 = vsyncpa [#allocation5], 1
    %s2268 = scalar_lea.sflag [#allocation5], 1
    %2269 = vsyncpa %s2268, 1
    %2270 = vsyncpa [#allocation7], 1

</llo_original>
